<compile_context>
chip_gen: v7x
topology: tpu7x:2x2x1
jax: 0.10.0
libtpu: 0.0.40
codegen_flags: <defaults>
</compile_context>

<pallas_src>
import jax
import jax.numpy as jnp
from jax.experimental import pallas as pl
from jax.experimental.pallas import tpu as pltpu

BN_EPS = 1e-5                       # PyTorch BatchNorm2d default
LANE = 128                          # lane-dense channel padding target
DEFAULT_ROW_BUDGET = 2 * 1024 * 1024  # activation-block bytes per grid step


# ----------------------------------------------------------------------------
# VMEM budgeting helpers
# ----------------------------------------------------------------------------
def _vmem_capacity_bytes():
    try:
        info = pltpu.get_tpu_info()
        cap = getattr(info, "vmem_capacity_bytes", None)
        if cap:
            return int(cap)
    except Exception:
        pass
    return 64 * 1024 * 1024  # conservative: v7x per-TensorCore VMEM


def _compiler_params(block_bytes, weight_bytes):
    cap = _vmem_capacity_bytes()
    need = 4 * block_bytes + 2 * weight_bytes + (8 << 20)
    limit = int(min(cap - (16 << 20), max(32 << 20, need)))
    return pltpu.CompilerParams(
        dimension_semantics=("parallel",),
        vmem_limit_bytes=limit)


def _pick_row_tile(N, H, W, cin, cpad, budget):
    """Largest H-tile (dividing H by halving) whose blocks fit the budget."""
    def bytes_at(th):
        xin = 2 * N * th * (W + 1) * cin * 2       # two bf16 input blocks
        yout = N * th * W * 4 * cpad * 4           # f32 phase-stacked output
        return xin + yout

    th = H
    while th % 2 == 0 and bytes_at(th) > budget:
        th //= 2
    return th, bytes_at(th)


# ----------------------------------------------------------------------------
# Pallas kernel: phase-decomposed ConvTranspose2d(k=3, s=2, p=1, out_pad=1)
# + per-tile BatchNorm partial statistics (sum / sum-of-squares).
#
# Output parity formulas (W[kh,kw] is the torch ConvTranspose weight tap):
#   y[2m  ,2n  ] = x[m  ,n  ]W11
#   y[2m  ,2n+1] = x[m  ,n  ]W12 + x[m  ,n+1]W10
#   y[2m+1,2n  ] = x[m  ,n  ]W21 + x[m+1,n  ]W01
#   y[2m+1,2n+1] = x[m  ,n  ]W22 + x[m  ,n+1]W20 + x[m+1,n  ]W02 + x[m+1,n+1]W00
# The 4 input "views" (x[m,n], x[m,n+1], x[m+1,n], x[m+1,n+1]) each hit the MXU
# once against a per-view concatenated weight -> exactly 9 useful tap-matmuls.
# ----------------------------------------------------------------------------
def _make_deconv_kernel(N, Th, W, Cin, C):
    R = N * Th * W

    def kernel(xlo_ref, xhi_ref, wa_ref, wb_ref, wc_ref, wd_ref, y_ref, st_ref):
        xlo = xlo_ref[...]                         # (N, Th, W+1, Cin) bf16
        xhi = xhi_ref[...]                         # row-shifted copy (1-row halo)
        s00 = xlo[:, :, 0:W, :].reshape(R, Cin)    # x[m,   n  ]
        s01 = xlo[:, :, 1:W + 1, :].reshape(R, Cin)  # x[m,   n+1]
        s10 = xhi[:, :, 0:W, :].reshape(R, Cin)    # x[m+1, n  ]
        s11 = xhi[:, :, 1:W + 1, :].reshape(R, Cin)  # x[m+1, n+1]

        p0 = jnp.dot(s00, wa_ref[...], preferred_element_type=jnp.float32)  # (R,4C)
        p1 = jnp.dot(s01, wb_ref[...], preferred_element_type=jnp.float32)  # (R,2C)
        p2 = jnp.dot(s10, wc_ref[...], preferred_element_type=jnp.float32)  # (R,2C)
        p3 = jnp.dot(s11, wd_ref[...], preferred_element_type=jnp.float32)  # (R, C)

        ee = p0[:, 0:C]
        eo = p0[:, C:2 * C] + p1[:, 0:C]
        oe = p0[:, 2 * C:3 * C] + p2[:, 0:C]
        oo = p0[:, 3 * C:4 * C] + p1[:, C:2 * C] + p2[:, C:2 * C] + p3

        for idx, ph in enumerate((ee, eo, oe, oo)):
            c0, c1 = idx * C, (idx + 1) * C
            y_ref[:, :, :, c0:c1] = ph.reshape(N, Th, W, C)
            st_ref[0, 0:1, c0:c1] = jnp.sum(ph, axis=0, keepdims=True)
            st_ref[0, 1:2, c0:c1] = jnp.sum(ph * ph, axis=0, keepdims=True)

    return kernel


def _view_weights(w_torch, cin_pad, cout_pad):
    """Per-input-view weights for the parity decomposition.
    w_torch: torch-layout ConvTranspose2d weight (cin, cout, 3, 3)."""
    cin, cout = w_torch.shape[0], w_torch.shape[1]

    def tap(kh, kw):
        blk = w_torch[:, :, kh, kw]
        return jnp.pad(blk, ((0, cin_pad - cin), (0, cout_pad - cout)))

    wa = jnp.concatenate([tap(1, 1), tap(1, 2), tap(2, 1), tap(2, 2)], axis=1)
    wb = jnp.concatenate([tap(1, 0), tap(2, 0)], axis=1)
    wc = jnp.concatenate([tap(0, 1), tap(0, 2)], axis=1)
    wd = tap(0, 0)
    return tuple(w.astype(jnp.bfloat16) for w in (wa, wb, wc, wd))


def _bn_relu_interleave(y, stats, C, skip):
    """Finalize: global batch-stat BN (gamma=1, beta=0) + ReLU + parity
    interleave (phase-stacked (N,H,W,4C) -> (N,2H,2W,C)) + optional skip add.
    Pure elementwise/layout work, left to XLA fusion by design."""
    N, H, W, _ = y.shape
    count = 4.0 * N * H * W
    tot = jnp.sum(stats, axis=0).reshape(2, 4, C).sum(axis=1)     # (2, C)
    mean = tot[0] / count
    var = jnp.maximum(tot[1] / count - mean * mean, 0.0)
    rstd = jax.lax.rsqrt(var + BN_EPS)
    yn = jnp.maximum((y.reshape(N, H, W, 2, 2, C) - mean) * rstd, 0.0)
    out = yn.transpose(0, 1, 3, 2, 4, 5).reshape(N, 2 * H, 2 * W, C)
    if skip is not None:
        out = out + skip
    return out


def deconv_bn_relu_stage(x, w_torch, cout_pad, skip=None,
                         row_budget=DEFAULT_ROW_BUDGET):
    """relu(BN(ConvTranspose2d(k=3,s=2,p=1,out_pad=1)(x))) (+ skip), NHWC.
    `x` may carry zero-padded channels beyond w_torch's in_planes; the output
    is zero-padded up to `cout_pad` channels (lane-dense)."""
    N, H, W, cin_pad = x.shape
    C = cout_pad
    wa, wb, wc, wd = _view_weights(w_torch, cin_pad, C)

    xb = x.astype(jnp.bfloat16)
    x_lo = jnp.pad(xb, ((0, 0), (0, 0), (0, 1), (0, 0)))              # x[m,  :]
    x_hi = jnp.pad(xb[:, 1:], ((0, 0), (0, 1), (0, 1), (0, 0)))       # x[m+1,:]

    Th, blk_bytes = _pick_row_tile(N, H, W, cin_pad, C, row_budget)
    T = H // Th
    wbytes = sum(int(w.size) * 2 for w in (wa, wb, wc, wd))

    y, stats = pl.pallas_call(
        _make_deconv_kernel(N, Th, W, cin_pad, C),
        grid=(T,),
        in_specs=[
            pl.BlockSpec((N, Th, W + 1, cin_pad), lambda i: (0, i, 0, 0)),
            pl.BlockSpec((N, Th, W + 1, cin_pad), lambda i: (0, i, 0, 0)),
            pl.BlockSpec(wa.shape, lambda i: (0, 0)),
            pl.BlockSpec(wb.shape, lambda i: (0, 0)),
            pl.BlockSpec(wc.shape, lambda i: (0, 0)),
            pl.BlockSpec(wd.shape, lambda i: (0, 0)),
        ],
        out_specs=(
            pl.BlockSpec((N, Th, W, 4 * C), lambda i: (0, i, 0, 0)),
            pl.BlockSpec((1, 2, 4 * C), lambda i: (i, 0, 0)),
        ),
        out_shape=(
            jax.ShapeDtypeStruct((N, H, W, 4 * C), jnp.float32),
            jax.ShapeDtypeStruct((T, 2, 4 * C), jnp.float32),
        ),
        compiler_params=_compiler_params(blk_bytes, wbytes),
    )(x_lo, x_hi, wa, wb, wc, wd)

    return _bn_relu_interleave(y, stats, C, skip)


# ----------------------------------------------------------------------------
# conv10: plain stride-1 "same" conv (7x7), batch-parallel grid.
# ----------------------------------------------------------------------------
def _make_conv_kernel(H, W, KH, KW, Cin, Cout):
    R = H * W

    def kernel(x_ref, w_ref, o_ref):
        x = x_ref[...]                          # (1, H+KH-1, W+KW-1, Cin) bf16
        w = w_ref[...]                          # (KH, KW, Cin, Cout) bf16
        acc = jnp.zeros((R, Cout), jnp.float32)
        for kh in range(KH):
            for kw in range(KW):
                patch = x[0, kh:kh + H, kw:kw + W, :].reshape(R, Cin)
                acc = acc + jnp.dot(patch, w[kh, kw],
                                    preferred_element_type=jnp.float32)
        o_ref[...] = acc.reshape(1, H, W, Cout)

    return kernel


def conv2d_same(x, w_hwio):
    N, H, W, Cin = x.shape
    KH, KW, _, Cout = w_hwio.shape
    ph, pw = (KH - 1) // 2, (KW - 1) // 2
    xb = jnp.pad(x.astype(jnp.bfloat16),
                 ((0, 0), (ph, KH - 1 - ph), (pw, KW - 1 - pw), (0, 0)))
    wb = w_hwio.astype(jnp.bfloat16)
    blk_bytes = (H + KH - 1) * (W + KW - 1) * Cin * 2 + H * W * Cout * 4
    return pl.pallas_call(
        _make_conv_kernel(H, W, KH, KW, Cin, Cout),
        grid=(N,),
        in_specs=[
            pl.BlockSpec((1, H + KH - 1, W + KW - 1, Cin), lambda i: (i, 0, 0, 0)),
            pl.BlockSpec((KH, KW, Cin, Cout), lambda i: (0, 0, 0, 0)),
        ],
        out_specs=pl.BlockSpec((1, H, W, Cout), lambda i: (i, 0, 0, 0)),
        out_shape=jax.ShapeDtypeStruct((N, H, W, Cout), jnp.float32),
        compiler_params=_compiler_params(blk_bytes, int(wb.size) * 2),
    )(xb, wb)


# ----------------------------------------------------------------------------
# Parameter construction + full decoder forward
# ----------------------------------------------------------------------------
def bilinear_deconv_weight(in_planes, out_planes, k=3, stride=2):
    """Deterministic bilinear init of conv(..., transposed=True), torch layout
    (in, out, k, k)."""
    centre = float(stride - 1) if k % 2 == 1 else stride - 0.5
    coords = jnp.arange(k, dtype=jnp.float32)
    w1d = 1.0 - jnp.abs((coords - centre) / stride)
    w2d = (w1d[:, None] * w1d[None, :]) / in_planes
    return jnp.broadcast_to(w2d, (in_planes, out_planes, k, k))


def _pad_ch(x, c):
    return jnp.pad(x, ((0, 0), (0, 0), (0, 0), (0, c - x.shape[-1])))


def _nchw_to_nhwc(x):
    return jnp.transpose(x, (0, 2, 3, 1))


@jax.jit
def seg_resnet_forward(x1, x2, x3, x4, x5):
    """Decoder half of SegResNet.forward (everything after forward_net)."""
    x1h, x2h, x3h, x4h, x5h = map(_nchw_to_nhwc, (x1, x2, x3, x4, x5))
    x1p = _pad_ch(x1h, LANE)          # lane-dense padding for 64-channel skips
    x2p = _pad_ch(x2h, LANE)

    w5 = bilinear_deconv_weight(512, 256)
    w6 = bilinear_deconv_weight(256, 128)
    w7 = bilinear_deconv_weight(128, 64)
    w8 = bilinear_deconv_weight(64, 64)
    w9 = bilinear_deconv_weight(64, 32)
    w10 = jnp.zeros((7, 7, 32, LANE), jnp.float32)  # conv10: zero init, Cout 1->128

    x = deconv_bn_relu_stage(x5h, w5, 256, skip=x4h)    # relu(bn5(conv5(x5))) + x4
    x = deconv_bn_relu_stage(x, w6, 128, skip=x3h)      # relu(bn6(conv6(.)))  + x3
    x = deconv_bn_relu_stage(x, w7, LANE, skip=x2p)     # relu(bn7(conv7(.)))  + x2
    x = deconv_bn_relu_stage(x, w8, LANE, skip=x1p)     # relu(bn8(conv8(.)))  + x1
    x = deconv_bn_relu_stage(x, w9, LANE, skip=None)    # relu(bn9(conv9(.)))
    x = conv2d_same(x[..., :32], w10)                   # conv10 (7x7, zero weight)
    x = x[..., :1]                                      # drop channel padding
    return jnp.transpose(x, (0, 3, 1, 2))               # back to NCHW


# ----------------------------------------------------------------------------
# Self-test: random-weight single stage vs a pure-JAX reference (also forces a
# multi-tile grid so the tiled partial-statistics path is exercised).
# ----------------------------------------------------------------------------
def _reference_deconv_bn_relu(x_real, w_torch, skip_real):
    w_eq = jnp.transpose(w_torch, (2, 3, 0, 1))[::-1, ::-1, :, :]
    y = jax.lax.conv_general_dilated(
        x_real.astype(jnp.bfloat16), w_eq.astype(jnp.bfloat16),
        window_strides=(1, 1), padding=((1, 2), (1, 2)),
        lhs_dilation=(2, 2),
        dimension_numbers=("NHWC", "HWIO", "NHWC"),
        preferred_element_type=jnp.float32)
    mean = jnp.mean(y, axis=(0, 1, 2), keepdims=True)
    var = jnp.mean((y - mean) ** 2, axis=(0, 1, 2), keepdims=True)
    out = jnp.maximum((y - mean) * jax.lax.rsqrt(var + BN_EPS), 0.0)
    if skip_real is not None:
        out = out + skip_real
    return out


def _self_test():
    key = jax.random.PRNGKey(123)
    kx, kw, ks = jax.random.split(key, 3)
    N, H, W, cin, cout = 2, 8, 8, 64, 32
    x_real = jax.random.normal(kx, (N, H, W, cin), jnp.float32)
    w_t = 0.1 * jax.random.normal(kw, (cin, cout, 3, 3), jnp.float32)
    skip = jax.random.normal(ks, (N, 2 * H, 2 * W, cout), jnp.float32)

    got = deconv_bn_relu_stage(_pad_ch(x_real, LANE), w_t, LANE,
                               skip=_pad_ch(skip, LANE),
                               row_budget=96 * 1024)   # -> several row tiles
    ref = _reference_deconv_bn_relu(x_real, w_t, skip)
    err = float(jnp.max(jnp.abs(got[..., :cout] - ref)))
    assert err < 2e-2, f"deconv self-test mismatch: max abs err = {err}"
    pad_err = float(jnp.max(jnp.abs(got[..., cout:])))
    assert pad_err == 0.0, f"channel padding leaked: {pad_err}"


if __name__ == "__main__":
    _self_test()

    key = jax.random.PRNGKey(0)
    k1, k2, k3, k4, k5 = jax.random.split(key, 5)
    N, H, W = 2, 32, 32
    # Synthetic backbone (forward_net) feature maps, NCHW like PyTorch:
    x1 = jax.random.normal(k1, (N, 64,  H // 2,  W // 2),  jnp.float32)
    x2 = jax.random.normal(k2, (N, 64,  H // 4,  W // 4),  jnp.float32)
    x3 = jax.random.normal(k3, (N, 128, H // 8,  W // 8),  jnp.float32)
    x4 = jax.random.normal(k4, (N, 256, H // 16, W // 16), jnp.float32)
    x5 = jax.random.normal(k5, (N, 512, H // 32, W // 32), jnp.float32)

    out = jax.block_until_ready(seg_resnet_forward(x1, x2, x3, x4, x5))

    assert out.shape == (N, 1, H, W), out.shape
    # conv10 is zero-initialized in __init__, so the forward output is exactly 0.
    assert bool(jnp.all(out == 0.0))
    print("KERNEL_OK")
</pallas_src>

<mosaic_0001>
module attributes {stable_mosaic.version = 11 : i64} {
  func.func @kernel(%arg0: i32, %arg1: memref<2x2x9x128xbf16, #tpu.memory_space<vmem>>, %arg2: memref<2x2x9x128xbf16, #tpu.memory_space<vmem>>, %arg3: memref<128x512xbf16, #tpu.memory_space<vmem>>, %arg4: memref<128x256xbf16, #tpu.memory_space<vmem>>, %arg5: memref<128x256xbf16, #tpu.memory_space<vmem>>, %arg6: memref<128x128xbf16, #tpu.memory_space<vmem>>, %arg7: memref<2x2x8x512xf32, #tpu.memory_space<vmem>>, %arg8: memref<1x2x512xf32, #tpu.memory_space<vmem>>) attributes {dimension_semantics = [#tpu.dimension_semantics<parallel>], iteration_bounds = array<i64: 4>, scalar_prefetch = 0 : i64, scratch_operands = 0 : i64, tpu.core_type = #tpu.core_type<tc>, window_params = [{transform_indices = @transform_0, window_bounds = array<i64: 2, 2, 9, 128>}, {transform_indices = @transform_1, window_bounds = array<i64: 2, 2, 9, 128>}, {pipeline_mode = #tpu.pipeline_mode<synchronous>, transform_indices = @transform_2, window_bounds = array<i64: 128, 512>}, {pipeline_mode = #tpu.pipeline_mode<synchronous>, transform_indices = @transform_3, window_bounds = array<i64: 128, 256>}, {pipeline_mode = #tpu.pipeline_mode<synchronous>, transform_indices = @transform_4, window_bounds = array<i64: 128, 256>}, {pipeline_mode = #tpu.pipeline_mode<synchronous>, transform_indices = @transform_5, window_bounds = array<i64: 128, 128>}, {transform_indices = @transform_6, window_bounds = array<i64: 2, 2, 8, 512>}, {transform_indices = @transform_7, window_bounds = array<i64: 1, 2, 512>}]} {
    %c0 = arith.constant 0 : index
    %c0_0 = arith.constant 0 : index
    %c0_1 = arith.constant 0 : index
    %c0_2 = arith.constant 0 : index
    %0 = vector.load %arg1[%c0, %c0_0, %c0_1, %c0_2] : memref<2x2x9x128xbf16, #tpu.memory_space<vmem>>, vector<2x2x9x128xbf16>
    %c0_3 = arith.constant 0 : index
    %c0_4 = arith.constant 0 : index
    %c0_5 = arith.constant 0 : index
    %c0_6 = arith.constant 0 : index
    %1 = vector.load %arg2[%c0_3, %c0_4, %c0_5, %c0_6] : memref<2x2x9x128xbf16, #tpu.memory_space<vmem>>, vector<2x2x9x128xbf16>
    %2 = vector.extract_strided_slice %0 {offsets = [0, 0, 0, 0], sizes = [2, 2, 8, 128], strides = [1, 1, 1, 1]} : vector<2x2x9x128xbf16> to vector<2x2x8x128xbf16>
    %3 = vector.shape_cast %2 : vector<2x2x8x128xbf16> to vector<32x128xbf16>
    %4 = vector.extract_strided_slice %0 {offsets = [0, 0, 1, 0], sizes = [2, 2, 8, 128], strides = [1, 1, 1, 1]} : vector<2x2x9x128xbf16> to vector<2x2x8x128xbf16>
    %5 = vector.shape_cast %4 : vector<2x2x8x128xbf16> to vector<32x128xbf16>
    %6 = vector.extract_strided_slice %1 {offsets = [0, 0, 0, 0], sizes = [2, 2, 8, 128], strides = [1, 1, 1, 1]} : vector<2x2x9x128xbf16> to vector<2x2x8x128xbf16>
    %7 = vector.shape_cast %6 : vector<2x2x8x128xbf16> to vector<32x128xbf16>
    %8 = vector.extract_strided_slice %1 {offsets = [0, 0, 1, 0], sizes = [2, 2, 8, 128], strides = [1, 1, 1, 1]} : vector<2x2x9x128xbf16> to vector<2x2x8x128xbf16>
    %9 = vector.shape_cast %8 : vector<2x2x8x128xbf16> to vector<32x128xbf16>
    %c0_7 = arith.constant 0 : index
    %c0_8 = arith.constant 0 : index
    %10 = vector.load %arg3[%c0_7, %c0_8] : memref<128x512xbf16, #tpu.memory_space<vmem>>, vector<128x512xbf16>
    %cst = arith.constant dense<0.000000e+00> : vector<32x512xf32>
    %11 = tpu.matmul %3, %10, %cst {dimension_numbers = #tpu.dot_dimension_numbers<[1], [0], [0], [1], [0, 0, 1, 1], [], []>} : vector<32x128xbf16>, vector<128x512xbf16>, vector<32x512xf32> -> vector<32x512xf32>
    %c0_9 = arith.constant 0 : index
    %c0_10 = arith.constant 0 : index
    %12 = vector.load %arg4[%c0_9, %c0_10] : memref<128x256xbf16, #tpu.memory_space<vmem>>, vector<128x256xbf16>
    %cst_11 = arith.constant dense<0.000000e+00> : vector<32x256xf32>
    %13 = tpu.matmul %5, %12, %cst_11 {dimension_numbers = #tpu.dot_dimension_numbers<[1], [0], [0], [1], [0, 0, 1, 1], [], []>} : vector<32x128xbf16>, vector<128x256xbf16>, vector<32x256xf32> -> vector<32x256xf32>
    %c0_12 = arith.constant 0 : index
    %c0_13 = arith.constant 0 : index
    %14 = vector.load %arg5[%c0_12, %c0_13] : memref<128x256xbf16, #tpu.memory_space<vmem>>, vector<128x256xbf16>
    %cst_14 = arith.constant dense<0.000000e+00> : vector<32x256xf32>
    %15 = tpu.matmul %7, %14, %cst_14 {dimension_numbers = #tpu.dot_dimension_numbers<[1], [0], [0], [1], [0, 0, 1, 1], [], []>} : vector<32x128xbf16>, vector<128x256xbf16>, vector<32x256xf32> -> vector<32x256xf32>
    %c0_15 = arith.constant 0 : index
    %c0_16 = arith.constant 0 : index
    %16 = vector.load %arg6[%c0_15, %c0_16] : memref<128x128xbf16, #tpu.memory_space<vmem>>, vector<128x128xbf16>
    %cst_17 = arith.constant dense<0.000000e+00> : vector<32x128xf32>
    %17 = tpu.matmul %9, %16, %cst_17 {dimension_numbers = #tpu.dot_dimension_numbers<[1], [0], [0], [1], [0, 0, 1, 1], [], []>} : vector<32x128xbf16>, vector<128x128xbf16>, vector<32x128xf32> -> vector<32x128xf32>
    %18 = vector.extract_strided_slice %11 {offsets = [0, 0], sizes = [32, 128], strides = [1, 1]} : vector<32x512xf32> to vector<32x128xf32>
    %19 = vector.extract_strided_slice %11 {offsets = [0, 128], sizes = [32, 128], strides = [1, 1]} : vector<32x512xf32> to vector<32x128xf32>
    %20 = vector.extract_strided_slice %13 {offsets = [0, 0], sizes = [32, 128], strides = [1, 1]} : vector<32x256xf32> to vector<32x128xf32>
    %21 = arith.addf %19, %20 : vector<32x128xf32>
    %22 = vector.extract_strided_slice %11 {offsets = [0, 256], sizes = [32, 128], strides = [1, 1]} : vector<32x512xf32> to vector<32x128xf32>
    %23 = vector.extract_strided_slice %15 {offsets = [0, 0], sizes = [32, 128], strides = [1, 1]} : vector<32x256xf32> to vector<32x128xf32>
    %24 = arith.addf %22, %23 : vector<32x128xf32>
    %25 = vector.extract_strided_slice %11 {offsets = [0, 384], sizes = [32, 128], strides = [1, 1]} : vector<32x512xf32> to vector<32x128xf32>
    %26 = vector.extract_strided_slice %13 {offsets = [0, 128], sizes = [32, 128], strides = [1, 1]} : vector<32x256xf32> to vector<32x128xf32>
    %27 = arith.addf %25, %26 : vector<32x128xf32>
    %28 = vector.extract_strided_slice %15 {offsets = [0, 128], sizes = [32, 128], strides = [1, 1]} : vector<32x256xf32> to vector<32x128xf32>
    %29 = arith.addf %27, %28 : vector<32x128xf32>
    %30 = arith.addf %29, %17 : vector<32x128xf32>
    %31 = vector.shape_cast %18 : vector<32x128xf32> to vector<2x2x8x128xf32>
    %c0_18 = arith.constant 0 : index
    %c0_19 = arith.constant 0 : index
    %c0_20 = arith.constant 0 : index
    %c0_21 = arith.constant 0 : index
    %32 = vector.load %arg7[%c0_18, %c0_19, %c0_20, %c0_21] : memref<2x2x8x512xf32, #tpu.memory_space<vmem>>, vector<2x2x8x128xf32>
    tpu.vector_store %arg7[%c0_18, %c0_19, %c0_20, %c0_21], %31 {strides = array<i32>} : memref<2x2x8x512xf32, #tpu.memory_space<vmem>>, vector<2x2x8x128xf32>,
    %cst_22 = arith.constant dense<0.000000e+00> : vector<128xf32>
    %33 = vector.multi_reduction <add>, %18, %cst_22 [0] : vector<32x128xf32> to vector<128xf32>
    %34 = vector.shape_cast %33 : vector<128xf32> to vector<1x128xf32>
    %c0_23 = arith.constant 0 : index
    %c0_24 = arith.constant 0 : index
    %c0_25 = arith.constant 0 : index
    %35 = vector.load %arg8[%c0_23, %c0_24, %c0_25] : memref<1x2x512xf32, #tpu.memory_space<vmem>>, vector<1x1x128xf32>
    %36 = vector.shape_cast %35 : vector<1x1x128xf32> to vector<1x128xf32>
    %37 = vector.shape_cast %34 : vector<1x128xf32> to vector<1x1x128xf32>
    tpu.vector_store %arg8[%c0_23, %c0_24, %c0_25], %37 {strides = array<i32>} : memref<1x2x512xf32, #tpu.memory_space<vmem>>, vector<1x1x128xf32>,
    %38 = arith.mulf %18, %18 : vector<32x128xf32>
    %cst_26 = arith.constant dense<0.000000e+00> : vector<128xf32>
    %39 = vector.multi_reduction <add>, %38, %cst_26 [0] : vector<32x128xf32> to vector<128xf32>
    %40 = vector.shape_cast %39 : vector<128xf32> to vector<1x128xf32>
    %c0_27 = arith.constant 0 : index
    %c1 = arith.constant 1 : index
    %c0_28 = arith.constant 0 : index
    %41 = vector.load %arg8[%c0_27, %c1, %c0_28] : memref<1x2x512xf32, #tpu.memory_space<vmem>>, vector<1x1x128xf32>
    %42 = vector.shape_cast %41 : vector<1x1x128xf32> to vector<1x128xf32>
    %43 = vector.shape_cast %40 : vector<1x128xf32> to vector<1x1x128xf32>
    tpu.vector_store %arg8[%c0_27, %c1, %c0_28], %43 {strides = array<i32>} : memref<1x2x512xf32, #tpu.memory_space<vmem>>, vector<1x1x128xf32>,
    %44 = vector.shape_cast %21 : vector<32x128xf32> to vector<2x2x8x128xf32>
    %c0_29 = arith.constant 0 : index
    %c0_30 = arith.constant 0 : index
    %c0_31 = arith.constant 0 : index
    %c128 = arith.constant 128 : index
    %45 = vector.load %arg7[%c0_29, %c0_30, %c0_31, %c128] : memref<2x2x8x512xf32, #tpu.memory_space<vmem>>, vector<2x2x8x128xf32>
    tpu.vector_store %arg7[%c0_29, %c0_30, %c0_31, %c128], %44 {strides = array<i32>} : memref<2x2x8x512xf32, #tpu.memory_space<vmem>>, vector<2x2x8x128xf32>,
    %cst_32 = arith.constant dense<0.000000e+00> : vector<128xf32>
    %46 = vector.multi_reduction <add>, %21, %cst_32 [0] : vector<32x128xf32> to vector<128xf32>
    %47 = vector.shape_cast %46 : vector<128xf32> to vector<1x128xf32>
    %c0_33 = arith.constant 0 : index
    %c0_34 = arith.constant 0 : index
    %c128_35 = arith.constant 128 : index
    %48 = vector.load %arg8[%c0_33, %c0_34, %c128_35] : memref<1x2x512xf32, #tpu.memory_space<vmem>>, vector<1x1x128xf32>
    %49 = vector.shape_cast %48 : vector<1x1x128xf32> to vector<1x128xf32>
    %50 = vector.shape_cast %47 : vector<1x128xf32> to vector<1x1x128xf32>
    tpu.vector_store %arg8[%c0_33, %c0_34, %c128_35], %50 {strides = array<i32>} : memref<1x2x512xf32, #tpu.memory_space<vmem>>, vector<1x1x128xf32>,
    %51 = arith.mulf %21, %21 : vector<32x128xf32>
    %cst_36 = arith.constant dense<0.000000e+00> : vector<128xf32>
    %52 = vector.multi_reduction <add>, %51, %cst_36 [0] : vector<32x128xf32> to vector<128xf32>
    %53 = vector.shape_cast %52 : vector<128xf32> to vector<1x128xf32>
    %c0_37 = arith.constant 0 : index
    %c1_38 = arith.constant 1 : index
    %c128_39 = arith.constant 128 : index
    %54 = vector.load %arg8[%c0_37, %c1_38, %c128_39] : memref<1x2x512xf32, #tpu.memory_space<vmem>>, vector<1x1x128xf32>
    %55 = vector.shape_cast %54 : vector<1x1x128xf32> to vector<1x128xf32>
    %56 = vector.shape_cast %53 : vector<1x128xf32> to vector<1x1x128xf32>
    tpu.vector_store %arg8[%c0_37, %c1_38, %c128_39], %56 {strides = array<i32>} : memref<1x2x512xf32, #tpu.memory_space<vmem>>, vector<1x1x128xf32>,
    %57 = vector.shape_cast %24 : vector<32x128xf32> to vector<2x2x8x128xf32>
    %c0_40 = arith.constant 0 : index
    %c0_41 = arith.constant 0 : index
    %c0_42 = arith.constant 0 : index
    %c256 = arith.constant 256 : index
    %58 = vector.load %arg7[%c0_40, %c0_41, %c0_42, %c256] : memref<2x2x8x512xf32, #tpu.memory_space<vmem>>, vector<2x2x8x128xf32>
    tpu.vector_store %arg7[%c0_40, %c0_41, %c0_42, %c256], %57 {strides = array<i32>} : memref<2x2x8x512xf32, #tpu.memory_space<vmem>>, vector<2x2x8x128xf32>,
    %cst_43 = arith.constant dense<0.000000e+00> : vector<128xf32>
    %59 = vector.multi_reduction <add>, %24, %cst_43 [0] : vector<32x128xf32> to vector<128xf32>
    %60 = vector.shape_cast %59 : vector<128xf32> to vector<1x128xf32>
    %c0_44 = arith.constant 0 : index
    %c0_45 = arith.constant 0 : index
    %c256_46 = arith.constant 256 : index
    %61 = vector.load %arg8[%c0_44, %c0_45, %c256_46] : memref<1x2x512xf32, #tpu.memory_space<vmem>>, vector<1x1x128xf32>
    %62 = vector.shape_cast %61 : vector<1x1x128xf32> to vector<1x128xf32>
    %63 = vector.shape_cast %60 : vector<1x128xf32> to vector<1x1x128xf32>
    tpu.vector_store %arg8[%c0_44, %c0_45, %c256_46], %63 {strides = array<i32>} : memref<1x2x512xf32, #tpu.memory_space<vmem>>, vector<1x1x128xf32>,
    %64 = arith.mulf %24, %24 : vector<32x128xf32>
    %cst_47 = arith.constant dense<0.000000e+00> : vector<128xf32>
    %65 = vector.multi_reduction <add>, %64, %cst_47 [0] : vector<32x128xf32> to vector<128xf32>
    %66 = vector.shape_cast %65 : vector<128xf32> to vector<1x128xf32>
    %c0_48 = arith.constant 0 : index
    %c1_49 = arith.constant 1 : index
    %c256_50 = arith.constant 256 : index
    %67 = vector.load %arg8[%c0_48, %c1_49, %c256_50] : memref<1x2x512xf32, #tpu.memory_space<vmem>>, vector<1x1x128xf32>
    %68 = vector.shape_cast %67 : vector<1x1x128xf32> to vector<1x128xf32>
    %69 = vector.shape_cast %66 : vector<1x128xf32> to vector<1x1x128xf32>
    tpu.vector_store %arg8[%c0_48, %c1_49, %c256_50], %69 {strides = array<i32>} : memref<1x2x512xf32, #tpu.memory_space<vmem>>, vector<1x1x128xf32>,
    %70 = vector.shape_cast %30 : vector<32x128xf32> to vector<2x2x8x128xf32>
    %c0_51 = arith.constant 0 : index
    %c0_52 = arith.constant 0 : index
    %c0_53 = arith.constant 0 : index
    %c384 = arith.constant 384 : index
    %71 = vector.load %arg7[%c0_51, %c0_52, %c0_53, %c384] : memref<2x2x8x512xf32, #tpu.memory_space<vmem>>, vector<2x2x8x128xf32>
    tpu.vector_store %arg7[%c0_51, %c0_52, %c0_53, %c384], %70 {strides = array<i32>} : memref<2x2x8x512xf32, #tpu.memory_space<vmem>>, vector<2x2x8x128xf32>,
    %cst_54 = arith.constant dense<0.000000e+00> : vector<128xf32>
    %72 = vector.multi_reduction <add>, %30, %cst_54 [0] : vector<32x128xf32> to vector<128xf32>
    %73 = vector.shape_cast %72 : vector<128xf32> to vector<1x128xf32>
    %c0_55 = arith.constant 0 : index
    %c0_56 = arith.constant 0 : index
    %c384_57 = arith.constant 384 : index
    %74 = vector.load %arg8[%c0_55, %c0_56, %c384_57] : memref<1x2x512xf32, #tpu.memory_space<vmem>>, vector<1x1x128xf32>
    %75 = vector.shape_cast %74 : vector<1x1x128xf32> to vector<1x128xf32>
    %76 = vector.shape_cast %73 : vector<1x128xf32> to vector<1x1x128xf32>
    tpu.vector_store %arg8[%c0_55, %c0_56, %c384_57], %76 {strides = array<i32>} : memref<1x2x512xf32, #tpu.memory_space<vmem>>, vector<1x1x128xf32>,
    %77 = arith.mulf %30, %30 : vector<32x128xf32>
    %cst_58 = arith.constant dense<0.000000e+00> : vector<128xf32>
    %78 = vector.multi_reduction <add>, %77, %cst_58 [0] : vector<32x128xf32> to vector<128xf32>
    %79 = vector.shape_cast %78 : vector<128xf32> to vector<1x128xf32>
    %c0_59 = arith.constant 0 : index
    %c1_60 = arith.constant 1 : index
    %c384_61 = arith.constant 384 : index
    %80 = vector.load %arg8[%c0_59, %c1_60, %c384_61] : memref<1x2x512xf32, #tpu.memory_space<vmem>>, vector<1x1x128xf32>
    %81 = vector.shape_cast %80 : vector<1x1x128xf32> to vector<1x128xf32>
    %82 = vector.shape_cast %79 : vector<1x128xf32> to vector<1x1x128xf32>
    tpu.vector_store %arg8[%c0_59, %c1_60, %c384_61], %82 {strides = array<i32>} : memref<1x2x512xf32, #tpu.memory_space<vmem>>, vector<1x1x128xf32>,
    return
  }
  func.func @transform_0(%arg0: i32) -> (i32, i32, i32, i32) {
    %c0_i32 = arith.constant 0 : i32
    %c0_i32_0 = arith.constant 0 : i32
    %c0_i32_1 = arith.constant 0 : i32
    %c0_i32_2 = arith.constant 0 : i32
    return %c0_i32, %arg0, %c0_i32_0, %c0_i32_1 : i32, i32, i32, i32
  }
  func.func @transform_1(%arg0: i32) -> (i32, i32, i32, i32) {
    %c0_i32 = arith.constant 0 : i32
    %c0_i32_0 = arith.constant 0 : i32
    %c0_i32_1 = arith.constant 0 : i32
    %c0_i32_2 = arith.constant 0 : i32
    return %c0_i32, %arg0, %c0_i32_0, %c0_i32_1 : i32, i32, i32, i32
  }
  func.func @transform_2(%arg0: i32) -> (i32, i32) {
    %c0_i32 = arith.constant 0 : i32
    %c0_i32_0 = arith.constant 0 : i32
    %c0_i32_1 = arith.constant 0 : i32
    return %c0_i32, %c0_i32_0 : i32, i32
  }
  func.func @transform_3(%arg0: i32) -> (i32, i32) {
    %c0_i32 = arith.constant 0 : i32
    %c0_i32_0 = arith.constant 0 : i32
    %c0_i32_1 = arith.constant 0 : i32
    return %c0_i32, %c0_i32_0 : i32, i32
  }
  func.func @transform_4(%arg0: i32) -> (i32, i32) {
    %c0_i32 = arith.constant 0 : i32
    %c0_i32_0 = arith.constant 0 : i32
    %c0_i32_1 = arith.constant 0 : i32
    return %c0_i32, %c0_i32_0 : i32, i32
  }
  func.func @transform_5(%arg0: i32) -> (i32, i32) {
    %c0_i32 = arith.constant 0 : i32
    %c0_i32_0 = arith.constant 0 : i32
    %c0_i32_1 = arith.constant 0 : i32
    return %c0_i32, %c0_i32_0 : i32, i32
  }
  func.func @transform_6(%arg0: i32) -> (i32, i32, i32, i32) {
    %c0_i32 = arith.constant 0 : i32
    %c0_i32_0 = arith.constant 0 : i32
    %c0_i32_1 = arith.constant 0 : i32
    %c0_i32_2 = arith.constant 0 : i32
    return %c0_i32, %arg0, %c0_i32_0, %c0_i32_1 : i32, i32, i32, i32
  }
  func.func @transform_7(%arg0: i32) -> (i32, i32, i32) {
    %c0_i32 = arith.constant 0 : i32
    %c0_i32_0 = arith.constant 0 : i32
    %c0_i32_1 = arith.constant 0 : i32
    return %arg0, %c0_i32, %c0_i32_0 : i32, i32, i32
  }
}

</mosaic_0001>

<llo_original>
// kernel: tpu_custom_call.1
$region0: #{tpu_custom_call.1}
  #allocation0 [shape = 'u32[]', space=smem, size = 0x4, offset = 0x4, fixed_abs, tag = 'smem constant byte address 0x4 - core index']
  #allocation1 [shape = 'u32[144,128]{1,0:T(1,128)}', space=vmem, size = 0x12000, scoped, tag = 'internal scratch']
  #allocation12 [shape = 's32[]', space=sflag, size = 0x4, offset = 0, fixed_abs, tag = 'sflag constant byte address 0x0 - dummy sync flag']
  %s0 = inlined_call_operand.vmem [shape: bf16[2,8,9,128], index: 0, kind: input, shape index: {}]
  %s1 = inlined_call_operand.vmem [shape: bf16[2,8,9,128], index: 1, kind: input, shape index: {}]
  %s2 = inlined_call_operand.vmem [shape: bf16[128,512], index: 2, kind: input, shape index: {}]
  %s3 = inlined_call_operand.vmem [shape: bf16[128,256], index: 3, kind: input, shape index: {}]
  %s4 = inlined_call_operand.hbm [shape: bf16[128,256], index: 4, kind: input, shape index: {}]
  %s5 = inlined_call_operand.hbm [shape: bf16[128,128], index: 5, kind: input, shape index: {}]
  %s6 = inlined_call_operand.hbm [shape: f32[2,8,8,512], index: 6, kind: output, shape index: {0}]
  %s7 = inlined_call_operand.hbm [shape: f32[4,2,512], index: 7, kind: output, shape index: {1}]
  %8 = xla_tuple %s6, %s7
  %s9 = sld [smem:[#allocation0]]
  $region155: #{tpu_custom_call.1} parent=0
    _
  %s11 = ssub.s32 1, %s9
  %s12 = scalar_select 0, %s11, %s9
  $region1: #{tpu_custom_call.1} parent=0
    #allocation2 [shape = 'u8[32768]{0}', space=vmem, size = 0x8000, scoped, tag = 'input window, operand 0']
    #allocation3 [shape = 'u8[32768]{0}', space=vmem, size = 0x8000, scoped, tag = 'input window, operand 1']
    #allocation4 [shape = 'u8[65536]{0}', space=vmem, size = 0x10000, scoped, tag = 'input window, operand 4, single buffered']
    #allocation5 [shape = 's32[2]{0}', space=sflag, size = 0x8, scoped, tag = 'scoped memory for tpu_custom_call.1']
    #allocation6 [shape = 's32[2]{0}', space=sflag, size = 0x8, scoped, tag = 'scoped memory for tpu_custom_call.1']
    #allocation7 [shape = 'u8[32768]{0}', space=vmem, size = 0x8000, scoped, tag = 'input window, operand 5, single buffered']
    #allocation8 [shape = 's32[1]{0}', space=sflag, size = 0x4, scoped, tag = 'scoped memory for tpu_custom_call.1']
    #allocation9 [shape = 'u8[131072]{0}', space=vmem, size = 0x20000, scoped, tag = 'output window, operand 0']
    #allocation10 [shape = 'u8[8192]{0}', space=vmem, size = 0x2000, scoped, tag = 'output window, operand 1']
    #allocation11 [shape = 's32[2]{0}', space=sflag, size = 0x8, scoped, tag = 'scoped memory for tpu_custom_call.1']
    %13 = vsyncpa [#allocation5], 0
    %14 = vsyncpa [#allocation8], 0
    %15 = vsyncpa [#allocation6], 0
    %s16 = scalar_lea.sflag [#allocation6], 1
    %17 = vsyncpa %s16, 0
    %18 = vsyncpa [#allocation11], 0
    %s19 = scalar_lea.sflag [#allocation11], 1
    %20 = vsyncpa %s19, 0
    loop: start=0, step=1, limit=6
    $region2: #{tpu_custom_call.1} parent=1 // loop_pre_header
      _
    $region3: #{tpu_custom_call.1} parent=1 // loop_header
      %s22 = sphi 0, %s26
      %p23 = scmp.ge.s32.totalorder %s22, 6
      %s32 = sphi 0, %s34
      %s35 = sphi 0, %s32
      %s36 = sphi 0, %s35
      %s52 = sphi 0, %s36
      %s58 = sphi 0, %s60
      %s61 = sphi 0, %s58
      %s62 = sphi 0, %s61
      %s78 = sphi 0, %s62
      %s82 = sphi 0, %s82
      %s84 = sphi 0, %s82
      %s85 = sphi 0, %s84
      %s99 = sphi 0, %s85
      %s103 = sphi 0, %s103
      %s105 = sphi 0, %s103
      %s106 = sphi 0, %s105
      %s120 = sphi 0, %s106
      %s124 = sphi 0, %s124
      %s126 = sphi 0, %s124
      %s127 = sphi 0, %s126
      %s141 = sphi 0, %s127
      %s145 = sphi 0, %s145
      %s147 = sphi 0, %s145
      %s148 = sphi 0, %s147
      %s162 = sphi 0, %s148
      %s168 = sphi 0, %s170
      %s171 = sphi 0, %s168
      %s172 = sphi 0, %s171
      %s188 = sphi 0, %s172
      %s194 = sphi 0, %s196
      %s197 = sphi 0, %s194
      %s198 = sphi 0, %s197
      %s214 = sphi 0, %s198
    $region4: #{tpu_custom_call.1} parent=1 // loop_header_branch
      %25 = sbr.rel (%p23) target = $region8
    $region5: #{tpu_custom_call.1} parent=1 // loop_body
      %s27 = ssub.s32 %s22, 1
      %s28 = ssub.s32 %s22, 2
      %s29 = sadd.s32 %s22, 1
      %s30 = ssub.s32 %s22, %s29
      %p31 = scmp.eq.s32.totalorder %s30, 0
      %s33 = sadd.s32 %s32, 1
      %s34 = scalar_select %p31, %s32, %s33
      %p37 = pneg %p31
      %p38 = scmp.eq.s32.totalorder %s22, 3
      %p39 = por %p37, %p38
      %p40 = scmp.ne.s32.totalorder %s32, %s35
      %p41 = scmp.eq.s32.totalorder %s22, 0
      %p42 = por %p40, %p41
      %p43 = scmp.ne.s32.totalorder %s32, %s35
      %p44 = scmp.eq.s32.totalorder %s27, 3
      %p45 = por %p43, %p44
      %p46 = scmp.ne.s32.totalorder %s35, %s36
      %p47 = scmp.eq.s32.totalorder %s27, 0
      %p48 = por %p46, %p47
      %p49 = scmp.ne.s32.totalorder %s35, %s36
      %p50 = scmp.eq.s32.totalorder %s28, 3
      %p51 = por %p49, %p50
      %p53 = scmp.ne.s32.totalorder %s36, %s52
      %p54 = scmp.eq.s32.totalorder %s28, 0
      %p55 = por %p53, %p54
      %s56 = ssub.s32 %s22, %s29
      %p57 = scmp.eq.s32.totalorder %s56, 0
      %s59 = sadd.s32 %s58, 1
      %s60 = scalar_select %p57, %s58, %s59
      %p63 = pneg %p57
      %p64 = scmp.eq.s32.totalorder %s22, 3
      %p65 = por %p63, %p64
      %p66 = scmp.ne.s32.totalorder %s58, %s61
      %p67 = scmp.eq.s32.totalorder %s22, 0
      %p68 = por %p66, %p67
      %p69 = scmp.ne.s32.totalorder %s58, %s61
      %p70 = scmp.eq.s32.totalorder %s27, 3
      %p71 = por %p69, %p70
      %p72 = scmp.ne.s32.totalorder %s61, %s62
      %p73 = scmp.eq.s32.totalorder %s27, 0
      %p74 = por %p72, %p73
      %p75 = scmp.ne.s32.totalorder %s61, %s62
      %p76 = scmp.eq.s32.totalorder %s28, 3
      %p77 = por %p75, %p76
      %p79 = scmp.ne.s32.totalorder %s62, %s78
      %p80 = scmp.eq.s32.totalorder %s28, 0
      %p81 = por %p79, %p80
      %s83 = sadd.s32 %s82, 1
      %p86 = scmp.eq.s32.totalorder %s22, 3
      %p87 = scmp.ne.s32.totalorder %s82, %s84
      %p88 = scmp.eq.s32.totalorder %s22, 0
      %p89 = por %p87, %p88
      %p90 = scmp.ne.s32.totalorder %s82, %s84
      %p91 = scmp.eq.s32.totalorder %s27, 3
      %p92 = por %p90, %p91
      %p93 = scmp.ne.s32.totalorder %s84, %s85
      %p94 = scmp.eq.s32.totalorder %s27, 0
      %p95 = por %p93, %p94
      %p96 = scmp.ne.s32.totalorder %s84, %s85
      %p97 = scmp.eq.s32.totalorder %s28, 3
      %p98 = por %p96, %p97
      %p100 = scmp.ne.s32.totalorder %s85, %s99
      %p101 = scmp.eq.s32.totalorder %s28, 0
      %p102 = por %p100, %p101
      %s104 = sadd.s32 %s103, 1
      %p107 = scmp.eq.s32.totalorder %s22, 3
      %p108 = scmp.ne.s32.totalorder %s103, %s105
      %p109 = scmp.eq.s32.totalorder %s22, 0
      %p110 = por %p108, %p109
      %p111 = scmp.ne.s32.totalorder %s103, %s105
      %p112 = scmp.eq.s32.totalorder %s27, 3
      %p113 = por %p111, %p112
      %p114 = scmp.ne.s32.totalorder %s105, %s106
      %p115 = scmp.eq.s32.totalorder %s27, 0
      %p116 = por %p114, %p115
      %p117 = scmp.ne.s32.totalorder %s105, %s106
      %p118 = scmp.eq.s32.totalorder %s28, 3
      %p119 = por %p117, %p118
      %p121 = scmp.ne.s32.totalorder %s106, %s120
      %p122 = scmp.eq.s32.totalorder %s28, 0
      %p123 = por %p121, %p122
      %s125 = sadd.s32 %s124, 1
      %p128 = scmp.eq.s32.totalorder %s22, 3
      %p129 = scmp.ne.s32.totalorder %s124, %s126
      %p130 = scmp.eq.s32.totalorder %s22, 0
      %p131 = por %p129, %p130
      %p132 = scmp.ne.s32.totalorder %s124, %s126
      %p133 = scmp.eq.s32.totalorder %s27, 3
      %p134 = por %p132, %p133
      %p135 = scmp.ne.s32.totalorder %s126, %s127
      %p136 = scmp.eq.s32.totalorder %s27, 0
      %p137 = por %p135, %p136
      %p138 = scmp.ne.s32.totalorder %s126, %s127
      %p139 = scmp.eq.s32.totalorder %s28, 3
      %p140 = por %p138, %p139
      %p142 = scmp.ne.s32.totalorder %s127, %s141
      %p143 = scmp.eq.s32.totalorder %s28, 0
      %p144 = por %p142, %p143
      %s146 = sadd.s32 %s145, 1
      %p149 = scmp.eq.s32.totalorder %s22, 3
      %p150 = scmp.ne.s32.totalorder %s145, %s147
      %p151 = scmp.eq.s32.totalorder %s22, 0
      %p152 = por %p150, %p151
      %p153 = scmp.ne.s32.totalorder %s145, %s147
      %p154 = scmp.eq.s32.totalorder %s27, 3
      %p155 = por %p153, %p154
      %p156 = scmp.ne.s32.totalorder %s147, %s148
      %p157 = scmp.eq.s32.totalorder %s27, 0
      %p158 = por %p156, %p157
      %p159 = scmp.ne.s32.totalorder %s147, %s148
      %p160 = scmp.eq.s32.totalorder %s28, 3
      %p161 = por %p159, %p160
      %p163 = scmp.ne.s32.totalorder %s148, %s162
      %p164 = scmp.eq.s32.totalorder %s28, 0
      %p165 = por %p163, %p164
      %s166 = ssub.s32 %s22, %s29
      %p167 = scmp.eq.s32.totalorder %s166, 0
      %s169 = sadd.s32 %s168, 1
      %s170 = scalar_select %p167, %s168, %s169
      %p173 = pneg %p167
      %p174 = scmp.eq.s32.totalorder %s22, 3
      %p175 = por %p173, %p174
      %p176 = scmp.ne.s32.totalorder %s168, %s171
      %p177 = scmp.eq.s32.totalorder %s22, 0
      %p178 = por %p176, %p177
      %p179 = scmp.ne.s32.totalorder %s168, %s171
      %p180 = scmp.eq.s32.totalorder %s27, 3
      %p181 = por %p179, %p180
      %p182 = scmp.ne.s32.totalorder %s171, %s172
      %p183 = scmp.eq.s32.totalorder %s27, 0
      %p184 = por %p182, %p183
      %p185 = scmp.ne.s32.totalorder %s171, %s172
      %p186 = scmp.eq.s32.totalorder %s28, 3
      %p187 = por %p185, %p186
      %p189 = scmp.ne.s32.totalorder %s172, %s188
      %p190 = scmp.eq.s32.totalorder %s28, 0
      %p191 = por %p189, %p190
      %s192 = ssub.s32 %s22, %s29
      %p193 = scmp.eq.s32.totalorder %s192, 0
      %s195 = sadd.s32 %s194, 1
      %s196 = scalar_select %p193, %s194, %s195
      %p199 = pneg %p193
      %p200 = scmp.eq.s32.totalorder %s22, 3
      %p201 = por %p199, %p200
      %p202 = scmp.ne.s32.totalorder %s194, %s197
      %p203 = scmp.eq.s32.totalorder %s22, 0
      %p204 = por %p202, %p203
      %p205 = scmp.ne.s32.totalorder %s194, %s197
      %p206 = scmp.eq.s32.totalorder %s27, 3
      %p207 = por %p205, %p206
      %p208 = scmp.ne.s32.totalorder %s197, %s198
      %p209 = scmp.eq.s32.totalorder %s27, 0
      %p210 = por %p208, %p209
      %p211 = scmp.ne.s32.totalorder %s197, %s198
      %p212 = scmp.eq.s32.totalorder %s28, 3
      %p213 = por %p211, %p212
      %p215 = scmp.ne.s32.totalorder %s198, %s214
      %p216 = scmp.eq.s32.totalorder %s28, 0
      %p217 = por %p215, %p216
      %p218 = scmp.le.s32.totalorder 1, %s22
      %p219 = scmp.lt.s32.totalorder %s22, 5
      %p220 = pnand %p218, %p219
      %p221 = pneg %p220
      // Predicated region
      $region9: #{tpu_custom_call.1} parent=5 // pred_check
        _
      $region10: #{tpu_custom_call.1} parent=5 // pred_check_branch
        %223 = sbr.rel (%p220) target = $region12
      $region11: #{tpu_custom_call.1} parent=5 // pred_region
        %s224 = ssub.s32 %s22, 1
        // Predicated region
        $region13: #{tpu_custom_call.1} parent=11 // pred_check
          %p225 = pneg %p95
        $region14: #{tpu_custom_call.1} parent=11 // pred_check_branch
          %227 = sbr.rel (%p225) target = $region16
        $region15: #{tpu_custom_call.1} parent=11 // pred_region
          _
        $region16: #{tpu_custom_call.1} parent=11 // pred_fallthru
          _
        // Predicated region
        $region17: #{tpu_custom_call.1} parent=11 // pred_check
          %p228 = pneg %p116
        $region18: #{tpu_custom_call.1} parent=11 // pred_check_branch
          %230 = sbr.rel (%p228) target = $region20
        $region19: #{tpu_custom_call.1} parent=11 // pred_region
          _
        $region20: #{tpu_custom_call.1} parent=11 // pred_fallthru
          _
        // Predicated region
        $region21: #{tpu_custom_call.1} parent=11 // pred_check
          %p231 = pneg %p137
        $region22: #{tpu_custom_call.1} parent=11 // pred_check_branch
          %233 = sbr.rel (%p231) target = $region24
        $region23: #{tpu_custom_call.1} parent=11 // pred_region
          %s235 = ssub.s32 2048, 2048
          %236 = vsyncadd [#allocation5], %s235
          %s237 = sshll.u32 [#allocation4], 4
          %s238 = int_to_ptr.vmem [resolvable:$true] %s237
          %243 = dma.hbm_to_vmem [thread:$0]  %s4, 2048, %s238, [#allocation5], 128, 128, 8
        $region24: #{tpu_custom_call.1} parent=11 // pred_fallthru
          _
        // Predicated region
        $region25: #{tpu_custom_call.1} parent=11 // pred_check
          %p244 = pneg %p158
        $region26: #{tpu_custom_call.1} parent=11 // pred_check_branch
          %246 = sbr.rel (%p244) target = $region28
        $region27: #{tpu_custom_call.1} parent=11 // pred_region
          %s248 = ssub.s32 1024, 1024
          %249 = vsyncadd [#allocation8], %s248
          %s250 = sshll.u32 [#allocation7], 4
          %s251 = int_to_ptr.vmem [resolvable:$true] %s250
          %256 = dma.hbm_to_vmem [thread:$0]  %s5, 1024, %s251, [#allocation8], 64, 64, 4
        $region28: #{tpu_custom_call.1} parent=11 // pred_fallthru
          _
      $region12: #{tpu_custom_call.1} parent=5 // pred_fallthru
        _
      %p257 = scmp.lt.s32.totalorder %s22, 4
      // Predicated region
      $region29: #{tpu_custom_call.1} parent=5 // pred_check
        %p258 = pneg %p257
      $region30: #{tpu_custom_call.1} parent=5 // pred_check_branch
        %260 = sbr.rel (%p258) target = $region32
      $region31: #{tpu_custom_call.1} parent=5 // pred_region
        // Predicated region
        $region33: #{tpu_custom_call.1} parent=31 // pred_check
          %p261 = pneg %p42
        $region34: #{tpu_custom_call.1} parent=31 // pred_check_branch
          %263 = sbr.rel (%p261) target = $region36
        $region35: #{tpu_custom_call.1} parent=31 // pred_region
          %s264 = sand.u32 %s32, 1
          %s265 = sand.u32 %s32, 1
          %s266 = smul.addr %s265, 32
          %s267 = scalar_lea.vmem [#allocation2], %s266
          %s268 = smul.u32 2, %s22
          %s269 = smul.addr %s268, 2
          %s270 = smul.addr %s269, 4
          %s271 = scalar_lea.vmem %s0, %s270
          // Predicated region
          $region37: #{tpu_custom_call.1} parent=35 // pred_check
            _
          $region38: #{tpu_custom_call.1} parent=35 // pred_check_branch
            %273 = sbr.rel (0) target = $region40
          $region39: #{tpu_custom_call.1} parent=35 // pred_region
            // Predicated region
            $region41: #{tpu_custom_call.1} parent=39 // pred_check
              _
            $region42: #{tpu_custom_call.1} parent=39 // pred_check_branch
              %275 = sbr.rel target = $region44
            $region43: #{tpu_custom_call.1} parent=39 // pred_region
              // Predicated region
              $region56: #{tpu_custom_call.1} parent=43 // pred_check
                _
              $region57: #{tpu_custom_call.1} parent=43 // pred_check_branch
                %304 = sbr.rel (0) target = $region59
              $region58: #{tpu_custom_call.1} parent=43 // pred_region
                loop: start=0, step=1, limit=1
                $region60: #{tpu_custom_call.1} parent=58 // loop_pre_header
                  _
                $region61: #{tpu_custom_call.1} parent=58 // loop_header
                  %s306 = sphi 0, %s310
                  %p307 = scmp.ge.s32.totalorder %s306, 1
                  %s311 = sphi %s271, %s271
                  %s312 = sphi %s267, %s267
                $region62: #{tpu_custom_call.1} parent=58 // loop_header_branch
                  %309 = sbr.rel (%p307) target = $region66
                $region63: #{tpu_custom_call.1} parent=58 // loop_body
                  _
                $region64: #{tpu_custom_call.1} parent=58 // loop_footer
                  %s310 = sadd.s32 1, %s306
                $region65: #{tpu_custom_call.1} parent=58 // loop_footer_branch
                  %305 = sbr.rel target = $region61
                $region66: #{tpu_custom_call.1} parent=58 // loop_exit
                  _
                loop: start=0, step=1, limit=1
                $region67: #{tpu_custom_call.1} parent=58 // loop_pre_header
                  _
                $region68: #{tpu_custom_call.1} parent=58 // loop_header
                  %s315 = sphi 0, %s319
                  %p316 = scmp.ge.s32.totalorder %s315, 1
                  %s320 = sphi %s271, %s271
                  %s321 = sphi %s267, %s267
                $region69: #{tpu_custom_call.1} parent=58 // loop_header_branch
                  %318 = sbr.rel (%p316) target = $region73
                $region70: #{tpu_custom_call.1} parent=58 // loop_body
                  %v322 = vld [vmem:[%s320] sm:$0xf]
                  %323 = vst [vmem:[%s321] sm:$0xf] %v322
                  %v324 = vld [vmem:[%s320 + $0x4] sm:$0xf]
                  %325 = vst [vmem:[%s321 + $0x4] sm:$0xf] %v324
                  %v326 = vld [vmem:[%s320 + $0x8] sm:$0xf]
                  %327 = vst [vmem:[%s321 + $0x8] sm:$0xf] %v326
                  %v328 = vld [vmem:[%s320 + $0xc] sm:$0xf]
                  %329 = vst [vmem:[%s321 + $0xc] sm:$0xf] %v328
                  %v330 = vld [vmem:[%s320 + $0x40] sm:$0xf]
                  %331 = vst [vmem:[%s321 + $0x10] sm:$0xf] %v330
                  %v332 = vld [vmem:[%s320 + $0x44] sm:$0xf]
                  %333 = vst [vmem:[%s321 + $0x14] sm:$0xf] %v332
                  %v334 = vld [vmem:[%s320 + $0x48] sm:$0xf]
                  %335 = vst [vmem:[%s321 + $0x18] sm:$0xf] %v334
                  %v336 = vld [vmem:[%s320 + $0x4c] sm:$0xf]
                  %337 = vst [vmem:[%s321 + $0x1c] sm:$0xf] %v336
                $region71: #{tpu_custom_call.1} parent=58 // loop_footer
                  %s319 = sadd.s32 1, %s315
                $region72: #{tpu_custom_call.1} parent=58 // loop_footer_branch
                  %314 = sbr.rel target = $region68
                $region73: #{tpu_custom_call.1} parent=58 // loop_exit
                  _
              $region59: #{tpu_custom_call.1} parent=43 // pred_fallthru
                _
            $region44: #{tpu_custom_call.1} parent=39 // pred_fallthru
              _
            // Predicated region
            $region45: #{tpu_custom_call.1} parent=39 // pred_check
              _
            $region46: #{tpu_custom_call.1} parent=39 // pred_check_branch
              %277 = sbr.rel (0) target = $region48
            $region47: #{tpu_custom_call.1} parent=39 // pred_region
              loop: start=0, step=1, limit=1
              $region49: #{tpu_custom_call.1} parent=47 // loop_pre_header
                _
              $region50: #{tpu_custom_call.1} parent=47 // loop_header
                %s280 = sphi 0, %s284
                %p281 = scmp.ge.s32.totalorder %s280, 1
                %s285 = sphi %s271, %s271
                %s286 = sphi %s267, %s267
              $region51: #{tpu_custom_call.1} parent=47 // loop_header_branch
                %283 = sbr.rel (%p281) target = $region55
              $region52: #{tpu_custom_call.1} parent=47 // loop_body
                %v287 = vld [vmem:[%s285] sm:$0xf]
                %288 = vst [vmem:[%s286] sm:$0xf] %v287
                %v289 = vld [vmem:[%s285 + $0x4] sm:$0xf]
                %290 = vst [vmem:[%s286 + $0x4] sm:$0xf] %v289
                %v291 = vld [vmem:[%s285 + $0x8] sm:$0xf]
                %292 = vst [vmem:[%s286 + $0x8] sm:$0xf] %v291
                %v293 = vld [vmem:[%s285 + $0xc] sm:$0xf]
                %294 = vst [vmem:[%s286 + $0xc] sm:$0xf] %v293
                %v295 = vld [vmem:[%s285 + $0x40] sm:$0xf]
                %296 = vst [vmem:[%s286 + $0x10] sm:$0xf] %v295
                %v297 = vld [vmem:[%s285 + $0x44] sm:$0xf]
                %298 = vst [vmem:[%s286 + $0x14] sm:$0xf] %v297
                %v299 = vld [vmem:[%s285 + $0x48] sm:$0xf]
                %300 = vst [vmem:[%s286 + $0x18] sm:$0xf] %v299
                %v301 = vld [vmem:[%s285 + $0x4c] sm:$0xf]
                %302 = vst [vmem:[%s286 + $0x1c] sm:$0xf] %v301
              $region53: #{tpu_custom_call.1} parent=47 // loop_footer
                %s284 = sadd.s32 1, %s280
              $region54: #{tpu_custom_call.1} parent=47 // loop_footer_branch
                %279 = sbr.rel target = $region50
              $region55: #{tpu_custom_call.1} parent=47 // loop_exit
                _
            $region48: #{tpu_custom_call.1} parent=39 // pred_fallthru
              _
          $region40: #{tpu_custom_call.1} parent=35 // pred_fallthru
            _
          %338 = vnop
        $region36: #{tpu_custom_call.1} parent=31 // pred_fallthru
          _
        // Predicated region
        $region74: #{tpu_custom_call.1} parent=31 // pred_check
          %p339 = pneg %p68
        $region75: #{tpu_custom_call.1} parent=31 // pred_check_branch
          %341 = sbr.rel (%p339) target = $region77
        $region76: #{tpu_custom_call.1} parent=31 // pred_region
          %s342 = sand.u32 %s58, 1
          %s343 = sand.u32 %s58, 1
          %s344 = smul.addr %s343, 32
          %s345 = scalar_lea.vmem [#allocation3], %s344
          %s346 = smul.u32 2, %s22
          %s347 = smul.addr %s346, 2
          %s348 = smul.addr %s347, 4
          %s349 = scalar_lea.vmem %s1, %s348
          // Predicated region
          $region78: #{tpu_custom_call.1} parent=76 // pred_check
            _
          $region79: #{tpu_custom_call.1} parent=76 // pred_check_branch
            %351 = sbr.rel (0) target = $region81
          $region80: #{tpu_custom_call.1} parent=76 // pred_region
            // Predicated region
            $region82: #{tpu_custom_call.1} parent=80 // pred_check
              _
            $region83: #{tpu_custom_call.1} parent=80 // pred_check_branch
              %353 = sbr.rel target = $region85
            $region84: #{tpu_custom_call.1} parent=80 // pred_region
              // Predicated region
              $region97: #{tpu_custom_call.1} parent=84 // pred_check
                _
              $region98: #{tpu_custom_call.1} parent=84 // pred_check_branch
                %382 = sbr.rel (0) target = $region100
              $region99: #{tpu_custom_call.1} parent=84 // pred_region
                loop: start=0, step=1, limit=1
                $region101: #{tpu_custom_call.1} parent=99 // loop_pre_header
                  _
                $region102: #{tpu_custom_call.1} parent=99 // loop_header
                  %s384 = sphi 0, %s388
                  %p385 = scmp.ge.s32.totalorder %s384, 1
                  %s389 = sphi %s349, %s349
                  %s390 = sphi %s345, %s345
                $region103: #{tpu_custom_call.1} parent=99 // loop_header_branch
                  %387 = sbr.rel (%p385) target = $region107
                $region104: #{tpu_custom_call.1} parent=99 // loop_body
                  _
                $region105: #{tpu_custom_call.1} parent=99 // loop_footer
                  %s388 = sadd.s32 1, %s384
                $region106: #{tpu_custom_call.1} parent=99 // loop_footer_branch
                  %383 = sbr.rel target = $region102
                $region107: #{tpu_custom_call.1} parent=99 // loop_exit
                  _
                loop: start=0, step=1, limit=1
                $region108: #{tpu_custom_call.1} parent=99 // loop_pre_header
                  _
                $region109: #{tpu_custom_call.1} parent=99 // loop_header
                  %s393 = sphi 0, %s397
                  %p394 = scmp.ge.s32.totalorder %s393, 1
                  %s398 = sphi %s349, %s349
                  %s399 = sphi %s345, %s345
                $region110: #{tpu_custom_call.1} parent=99 // loop_header_branch
                  %396 = sbr.rel (%p394) target = $region114
                $region111: #{tpu_custom_call.1} parent=99 // loop_body
                  %v400 = vld [vmem:[%s398] sm:$0xf]
                  %401 = vst [vmem:[%s399] sm:$0xf] %v400
                  %v402 = vld [vmem:[%s398 + $0x4] sm:$0xf]
                  %403 = vst [vmem:[%s399 + $0x4] sm:$0xf] %v402
                  %v404 = vld [vmem:[%s398 + $0x8] sm:$0xf]
                  %405 = vst [vmem:[%s399 + $0x8] sm:$0xf] %v404
                  %v406 = vld [vmem:[%s398 + $0xc] sm:$0xf]
                  %407 = vst [vmem:[%s399 + $0xc] sm:$0xf] %v406
                  %v408 = vld [vmem:[%s398 + $0x40] sm:$0xf]
                  %409 = vst [vmem:[%s399 + $0x10] sm:$0xf] %v408
                  %v410 = vld [vmem:[%s398 + $0x44] sm:$0xf]
                  %411 = vst [vmem:[%s399 + $0x14] sm:$0xf] %v410
                  %v412 = vld [vmem:[%s398 + $0x48] sm:$0xf]
                  %413 = vst [vmem:[%s399 + $0x18] sm:$0xf] %v412
                  %v414 = vld [vmem:[%s398 + $0x4c] sm:$0xf]
                  %415 = vst [vmem:[%s399 + $0x1c] sm:$0xf] %v414
                $region112: #{tpu_custom_call.1} parent=99 // loop_footer
                  %s397 = sadd.s32 1, %s393
                $region113: #{tpu_custom_call.1} parent=99 // loop_footer_branch
                  %392 = sbr.rel target = $region109
                $region114: #{tpu_custom_call.1} parent=99 // loop_exit
                  _
              $region100: #{tpu_custom_call.1} parent=84 // pred_fallthru
                _
            $region85: #{tpu_custom_call.1} parent=80 // pred_fallthru
              _
            // Predicated region
            $region86: #{tpu_custom_call.1} parent=80 // pred_check
              _
            $region87: #{tpu_custom_call.1} parent=80 // pred_check_branch
              %355 = sbr.rel (0) target = $region89
            $region88: #{tpu_custom_call.1} parent=80 // pred_region
              loop: start=0, step=1, limit=1
              $region90: #{tpu_custom_call.1} parent=88 // loop_pre_header
                _
              $region91: #{tpu_custom_call.1} parent=88 // loop_header
                %s358 = sphi 0, %s362
                %p359 = scmp.ge.s32.totalorder %s358, 1
                %s363 = sphi %s349, %s349
                %s364 = sphi %s345, %s345
              $region92: #{tpu_custom_call.1} parent=88 // loop_header_branch
                %361 = sbr.rel (%p359) target = $region96
              $region93: #{tpu_custom_call.1} parent=88 // loop_body
                %v365 = vld [vmem:[%s363] sm:$0xf]
                %366 = vst [vmem:[%s364] sm:$0xf] %v365
                %v367 = vld [vmem:[%s363 + $0x4] sm:$0xf]
                %368 = vst [vmem:[%s364 + $0x4] sm:$0xf] %v367
                %v369 = vld [vmem:[%s363 + $0x8] sm:$0xf]
                %370 = vst [vmem:[%s364 + $0x8] sm:$0xf] %v369
                %v371 = vld [vmem:[%s363 + $0xc] sm:$0xf]
                %372 = vst [vmem:[%s364 + $0xc] sm:$0xf] %v371
                %v373 = vld [vmem:[%s363 + $0x40] sm:$0xf]
                %374 = vst [vmem:[%s364 + $0x10] sm:$0xf] %v373
                %v375 = vld [vmem:[%s363 + $0x44] sm:$0xf]
                %376 = vst [vmem:[%s364 + $0x14] sm:$0xf] %v375
                %v377 = vld [vmem:[%s363 + $0x48] sm:$0xf]
                %378 = vst [vmem:[%s364 + $0x18] sm:$0xf] %v377
                %v379 = vld [vmem:[%s363 + $0x4c] sm:$0xf]
                %380 = vst [vmem:[%s364 + $0x1c] sm:$0xf] %v379
              $region94: #{tpu_custom_call.1} parent=88 // loop_footer
                %s362 = sadd.s32 1, %s358
              $region95: #{tpu_custom_call.1} parent=88 // loop_footer_branch
                %357 = sbr.rel target = $region91
              $region96: #{tpu_custom_call.1} parent=88 // loop_exit
                _
            $region89: #{tpu_custom_call.1} parent=80 // pred_fallthru
              _
          $region81: #{tpu_custom_call.1} parent=76 // pred_fallthru
            _
          %416 = vnop
        $region77: #{tpu_custom_call.1} parent=31 // pred_fallthru
          _
      $region32: #{tpu_custom_call.1} parent=5 // pred_fallthru
        _
      %p417 = scmp.le.s32.totalorder 1, %s22
      %p418 = scmp.lt.s32.totalorder %s22, 5
      %p419 = pnand %p417, %p418
      %p420 = pneg %p419
      // Predicated region
      $region115: #{tpu_custom_call.1} parent=5 // pred_check
        _
      $region116: #{tpu_custom_call.1} parent=5 // pred_check_branch
        %422 = sbr.rel (%p419) target = $region118
      $region117: #{tpu_custom_call.1} parent=5 // pred_region
        %s423 = ssub.s32 %s22, 1
        %s424 = sand.u32 %s35, 1
        %s425 = sand.u32 %s35, 1
        %s426 = smul.addr %s425, 32
        %s427 = scalar_lea.vmem [#allocation2], %s426
        // Predicated region
        $region119: #{tpu_custom_call.1} parent=117 // pred_check
          %p428 = pneg %p48
        $region120: #{tpu_custom_call.1} parent=117 // pred_check_branch
          %430 = sbr.rel (%p428) target = $region122
        $region121: #{tpu_custom_call.1} parent=117 // pred_region
          _
        $region122: #{tpu_custom_call.1} parent=117 // pred_fallthru
          _
        %s431 = sand.u32 %s61, 1
        %s432 = sand.u32 %s61, 1
        %s433 = smul.addr %s432, 32
        %s434 = scalar_lea.vmem [#allocation3], %s433
        // Predicated region
        $region123: #{tpu_custom_call.1} parent=117 // pred_check
          %p435 = pneg %p74
        $region124: #{tpu_custom_call.1} parent=117 // pred_check_branch
          %437 = sbr.rel (%p435) target = $region126
        $region125: #{tpu_custom_call.1} parent=117 // pred_region
          _
        $region126: #{tpu_custom_call.1} parent=117 // pred_fallthru
          _
        // Predicated region
        $region127: #{tpu_custom_call.1} parent=117 // pred_check
          %p438 = pneg %p137
        $region128: #{tpu_custom_call.1} parent=117 // pred_check_branch
          %440 = sbr.rel (%p438) target = $region130
        $region129: #{tpu_custom_call.1} parent=117 // pred_region
          %441 = dma.done [#allocation5], 2048
        $region130: #{tpu_custom_call.1} parent=117 // pred_fallthru
          _
        // Predicated region
        $region131: #{tpu_custom_call.1} parent=117 // pred_check
          %p442 = pneg %p158
        $region132: #{tpu_custom_call.1} parent=117 // pred_check_branch
          %444 = sbr.rel (%p442) target = $region134
        $region133: #{tpu_custom_call.1} parent=117 // pred_region
          %445 = dma.done [#allocation8], 1024
        $region134: #{tpu_custom_call.1} parent=117 // pred_fallthru
          _
        %s446 = sand.u32 %s35, 1
        %s447 = sand.u32 %s35, 1
        %s448 = smul.addr %s447, 32
        %s449 = scalar_lea.vmem [#allocation2], %s448
        %p450 = pneg %p48
        %p451 = pneg %p45
        %s452 = sand.u32 %s61, 1
        %s453 = sand.u32 %s61, 1
        %s454 = smul.addr %s453, 32
        %s455 = scalar_lea.vmem [#allocation3], %s454
        %p456 = pneg %p74
        %p457 = pneg %p71
        %p458 = pneg %p95
        %p459 = pneg %p92
        %p460 = pneg %p116
        %p461 = pneg %p113
        %p462 = pneg %p137
        %p463 = pneg %p134
        %p464 = pneg %p158
        %p465 = pneg %p155
        %p466 = pneg %p184
        %p467 = pneg %p181
        %s468 = sand.u32 %s171, 1
        %s469 = scalar_lea.sflag [#allocation6], %s468
        %s470 = sand.u32 %s171, 1
        %s471 = smul.addr %s470, 128
        %s472 = scalar_lea.vmem [#allocation9], %s471
        %p473 = pneg %p210
        %p474 = pneg %p207
        %s475 = sand.u32 %s197, 1
        %s476 = scalar_lea.sflag [#allocation11], %s475
        %s477 = sand.u32 %s197, 1
        %s478 = smul.addr %s477, 8
        %s479 = scalar_lea.vmem [#allocation10], %s478
        %s480 = smul.u32 2, %s27
        %s481 = smul.u32 2, %s27
        %s482 = smul.u32 2, %s27
        %v484 = vld [vmem:[%s427] sm:$0xf]
        %v485 = vld [vmem:[%s427 + $0x4] sm:$0x1]
        %v486 = vld [vmem:[%s427 + $0x8] sm:$0xf]
        %v487 = vld [vmem:[%s427 + $0xc] sm:$0x1]
        %v488 = vld [vmem:[%s427 + $0x10] sm:$0xf]
        %v489 = vld [vmem:[%s427 + $0x14] sm:$0x1]
        %v490 = vld [vmem:[%s427 + $0x18] sm:$0xf]
        %v491 = vld [vmem:[%s427 + $0x1c] sm:$0x1]
        %v492 = vld [vmem:[%s434] sm:$0xf]
        %v493 = vld [vmem:[%s434 + $0x4] sm:$0x1]
        %v494 = vld [vmem:[%s434 + $0x8] sm:$0xf]
        %v495 = vld [vmem:[%s434 + $0xc] sm:$0x1]
        %v496 = vld [vmem:[%s434 + $0x10] sm:$0xf]
        %v497 = vld [vmem:[%s434 + $0x14] sm:$0x1]
        %v498 = vld [vmem:[%s434 + $0x18] sm:$0xf]
        %v499 = vld [vmem:[%s434 + $0x1c] sm:$0x1]
        %vm500 = vsmask.f32 3328
        %vm501 = vsmask.f32 7440
        %vm502 = vmor %vm500, %vm501
        %v504 = vshrl.u32 %v484, 16
        %v506 = vrot.slane %v504, 4
        %v507 = vshll.u32 %v484, 16
        %v509 = vrot.slane %v507, 5
        %v510 = vor.u32 %v506, %v509
        %v511 = vrot.slane %v510, 4
        %v513 = vshll.u32 %v485, 16
        %v515 = vrot.slane %v513, 5
        %v516 = vsel %vm502, %v511, %v515
        %v518 = vshrl.u32 %v486, 16
        %v520 = vrot.slane %v518, 4
        %v521 = vshll.u32 %v486, 16
        %v523 = vrot.slane %v521, 5
        %v524 = vor.u32 %v520, %v523
        %v525 = vrot.slane %v524, 4
        %v527 = vshll.u32 %v487, 16
        %v529 = vrot.slane %v527, 5
        %v530 = vsel %vm502, %v525, %v529
        %v532 = vshrl.u32 %v488, 16
        %v534 = vrot.slane %v532, 4
        %v535 = vshll.u32 %v488, 16
        %v537 = vrot.slane %v535, 5
        %v538 = vor.u32 %v534, %v537
        %v539 = vrot.slane %v538, 4
        %v541 = vshll.u32 %v489, 16
        %v543 = vrot.slane %v541, 5
        %v544 = vsel %vm502, %v539, %v543
        %v546 = vshrl.u32 %v490, 16
        %v548 = vrot.slane %v546, 4
        %v549 = vshll.u32 %v490, 16
        %v551 = vrot.slane %v549, 5
        %v552 = vor.u32 %v548, %v551
        %v553 = vrot.slane %v552, 4
        %v555 = vshll.u32 %v491, 16
        %v557 = vrot.slane %v555, 5
        %v558 = vsel %vm502, %v553, %v557
        %v560 = vshrl.u32 %v492, 16
        %v562 = vrot.slane %v560, 4
        %v563 = vshll.u32 %v492, 16
        %v565 = vrot.slane %v563, 5
        %v566 = vor.u32 %v562, %v565
        %v567 = vrot.slane %v566, 4
        %v569 = vshll.u32 %v493, 16
        %v571 = vrot.slane %v569, 5
        %v572 = vsel %vm502, %v567, %v571
        %v574 = vshrl.u32 %v494, 16
        %v576 = vrot.slane %v574, 4
        %v577 = vshll.u32 %v494, 16
        %v579 = vrot.slane %v577, 5
        %v580 = vor.u32 %v576, %v579
        %v581 = vrot.slane %v580, 4
        %v583 = vshll.u32 %v495, 16
        %v585 = vrot.slane %v583, 5
        %v586 = vsel %vm502, %v581, %v585
        %v588 = vshrl.u32 %v496, 16
        %v590 = vrot.slane %v588, 4
        %v591 = vshll.u32 %v496, 16
        %v593 = vrot.slane %v591, 5
        %v594 = vor.u32 %v590, %v593
        %v595 = vrot.slane %v594, 4
        %v597 = vshll.u32 %v497, 16
        %v599 = vrot.slane %v597, 5
        %v600 = vsel %vm502, %v595, %v599
        %v602 = vshrl.u32 %v498, 16
        %v604 = vrot.slane %v602, 4
        %v605 = vshll.u32 %v498, 16
        %v607 = vrot.slane %v605, 5
        %v608 = vor.u32 %v604, %v607
        %v609 = vrot.slane %v608, 4
        %v611 = vshll.u32 %v499, 16
        %v613 = vrot.slane %v611, 5
        %v614 = vsel %vm502, %v609, %v613
        %v615 = vld [vmem:[%s2] sm:$0xff]
        %v616 = vld [vmem:[%s2 + $0x8] sm:$0xff]
        %v617 = vld [vmem:[%s2 + $0x10] sm:$0xff]
        %v618 = vld [vmem:[%s2 + $0x18] sm:$0xff]
        %v619 = vld [vmem:[%s2 + $0x20] sm:$0xff]
        %v620 = vld [vmem:[%s2 + $0x28] sm:$0xff]
        %v621 = vld [vmem:[%s2 + $0x30] sm:$0xff]
        %v622 = vld [vmem:[%s2 + $0x38] sm:$0xff]
        %v623 = vld [vmem:[%s2 + $0x40] sm:$0xff]
        %v624 = vld [vmem:[%s2 + $0x48] sm:$0xff]
        %v625 = vld [vmem:[%s2 + $0x50] sm:$0xff]
        %v626 = vld [vmem:[%s2 + $0x58] sm:$0xff]
        %v627 = vld [vmem:[%s2 + $0x60] sm:$0xff]
        %v628 = vld [vmem:[%s2 + $0x68] sm:$0xff]
        %v629 = vld [vmem:[%s2 + $0x70] sm:$0xff]
        %v630 = vld [vmem:[%s2 + $0x78] sm:$0xff]
        %v631 = vld [vmem:[%s2 + $0x80] sm:$0xff]
        %v632 = vld [vmem:[%s2 + $0x88] sm:$0xff]
        %v633 = vld [vmem:[%s2 + $0x90] sm:$0xff]
        %v634 = vld [vmem:[%s2 + $0x98] sm:$0xff]
        %v635 = vld [vmem:[%s2 + $0xa0] sm:$0xff]
        %v636 = vld [vmem:[%s2 + $0xa8] sm:$0xff]
        %v637 = vld [vmem:[%s2 + $0xb0] sm:$0xff]
        %v638 = vld [vmem:[%s2 + $0xb8] sm:$0xff]
        %v639 = vld [vmem:[%s2 + $0xc0] sm:$0xff]
        %v640 = vld [vmem:[%s2 + $0xc8] sm:$0xff]
        %v641 = vld [vmem:[%s2 + $0xd0] sm:$0xff]
        %v642 = vld [vmem:[%s2 + $0xd8] sm:$0xff]
        %v643 = vld [vmem:[%s2 + $0xe0] sm:$0xff]
        %v644 = vld [vmem:[%s2 + $0xe8] sm:$0xff]
        %v645 = vld [vmem:[%s2 + $0xf0] sm:$0xff]
        %v646 = vld [vmem:[%s2 + $0xf8] sm:$0xff]
        %v651 = vunpack.c.l.b16 %v484
        %v652 = vunpack.c.l.b16 %v486
        %v653 = vunpack.c.l.b16 %v488
        %v654 = vunpack.c.l.b16 %v490
        %v655 = vpack.c.b16 %v652, %v651
        %v656 = vpack.c.b16 %v654, %v653
        %v691 = vunpack.c.l.b16 %v615
        %v692 = vunpack.c.h.b16 %v615
        %v693 = vunpack.c.l.b16 %v616
        %v694 = vunpack.c.h.b16 %v616
        %v695 = vunpack.c.l.b16 %v617
        %v696 = vunpack.c.h.b16 %v617
        %v697 = vunpack.c.l.b16 %v618
        %v698 = vunpack.c.h.b16 %v618
        %v699 = vunpack.c.l.b16 %v619
        %v700 = vunpack.c.h.b16 %v619
        %v701 = vunpack.c.l.b16 %v620
        %v702 = vunpack.c.h.b16 %v620
        %v703 = vunpack.c.l.b16 %v621
        %v704 = vunpack.c.h.b16 %v621
        %v705 = vunpack.c.l.b16 %v622
        %v706 = vunpack.c.h.b16 %v622
        %v707 = vunpack.c.l.b16 %v623
        %v708 = vunpack.c.h.b16 %v623
        %v709 = vunpack.c.l.b16 %v624
        %v710 = vunpack.c.h.b16 %v624
        %v711 = vunpack.c.l.b16 %v625
        %v712 = vunpack.c.h.b16 %v625
        %v713 = vunpack.c.l.b16 %v626
        %v714 = vunpack.c.h.b16 %v626
        %v715 = vunpack.c.l.b16 %v627
        %v716 = vunpack.c.h.b16 %v627
        %v717 = vunpack.c.l.b16 %v628
        %v718 = vunpack.c.h.b16 %v628
        %v719 = vunpack.c.l.b16 %v629
        %v720 = vunpack.c.h.b16 %v629
        %v721 = vunpack.c.l.b16 %v630
        %v722 = vunpack.c.h.b16 %v630
        %v723 = vunpack.c.l.b16 %v631
        %v724 = vunpack.c.h.b16 %v631
        %v725 = vunpack.c.l.b16 %v632
        %v726 = vunpack.c.h.b16 %v632
        %v727 = vunpack.c.l.b16 %v633
        %v728 = vunpack.c.h.b16 %v633
        %v729 = vunpack.c.l.b16 %v634
        %v730 = vunpack.c.h.b16 %v634
        %v731 = vunpack.c.l.b16 %v635
        %v732 = vunpack.c.h.b16 %v635
        %v733 = vunpack.c.l.b16 %v636
        %v734 = vunpack.c.h.b16 %v636
        %v735 = vunpack.c.l.b16 %v637
        %v736 = vunpack.c.h.b16 %v637
        %v737 = vunpack.c.l.b16 %v638
        %v738 = vunpack.c.h.b16 %v638
        %v739 = vunpack.c.l.b16 %v639
        %v740 = vunpack.c.h.b16 %v639
        %v741 = vunpack.c.l.b16 %v640
        %v742 = vunpack.c.h.b16 %v640
        %v743 = vunpack.c.l.b16 %v641
        %v744 = vunpack.c.h.b16 %v641
        %v745 = vunpack.c.l.b16 %v642
        %v746 = vunpack.c.h.b16 %v642
        %v747 = vunpack.c.l.b16 %v643
        %v748 = vunpack.c.h.b16 %v643
        %v749 = vunpack.c.l.b16 %v644
        %v750 = vunpack.c.h.b16 %v644
        %v751 = vunpack.c.l.b16 %v645
        %v752 = vunpack.c.h.b16 %v645
        %v753 = vunpack.c.l.b16 %v646
        %v754 = vunpack.c.h.b16 %v646
        %v755 = vpack.c.b16 %v695, %v691
        %v756 = vpack.c.b16 %v696, %v692
        %v757 = vpack.c.b16 %v697, %v693
        %v758 = vpack.c.b16 %v698, %v694
        %v759 = vpack.c.b16 %v703, %v699
        %v760 = vpack.c.b16 %v704, %v700
        %v761 = vpack.c.b16 %v705, %v701
        %v762 = vpack.c.b16 %v706, %v702
        %v763 = vpack.c.b16 %v711, %v707
        %v764 = vpack.c.b16 %v712, %v708
        %v765 = vpack.c.b16 %v713, %v709
        %v766 = vpack.c.b16 %v714, %v710
        %v767 = vpack.c.b16 %v719, %v715
        %v768 = vpack.c.b16 %v720, %v716
        %v769 = vpack.c.b16 %v721, %v717
        %v770 = vpack.c.b16 %v722, %v718
        %v771 = vpack.c.b16 %v727, %v723
        %v772 = vpack.c.b16 %v728, %v724
        %v773 = vpack.c.b16 %v729, %v725
        %v774 = vpack.c.b16 %v730, %v726
        %v775 = vpack.c.b16 %v735, %v731
        %v776 = vpack.c.b16 %v736, %v732
        %v777 = vpack.c.b16 %v737, %v733
        %v778 = vpack.c.b16 %v738, %v734
        %v779 = vpack.c.b16 %v743, %v739
        %v780 = vpack.c.b16 %v744, %v740
        %v781 = vpack.c.b16 %v745, %v741
        %v782 = vpack.c.b16 %v746, %v742
        %v783 = vpack.c.b16 %v751, %v747
        %v784 = vpack.c.b16 %v752, %v748
        %v785 = vpack.c.b16 %v753, %v749
        %v786 = vpack.c.b16 %v754, %v750
        %819 = vmatprep.subr.bf16.mxu0 %v756
        %820 = vmatpush1.bf16.msra.mxu0 %v755
        %821 = vmatprep.subr.bf16.mxu0 %v760
        %822 = vmatpush1.bf16.msra.mxu0 %v759
        %823 = vmatprep.subr.bf16.mxu0 %v764
        %824 = vmatpush1.bf16.msra.mxu0 %v763
        %825 = vmatprep.subr.bf16.mxu0 %v768
        %826 = vmatpush1.bf16.msra.mxu0 %v767
        %827 = vmatprep.subr.bf16.mxu0 %v772
        %828 = vmatpush1.bf16.msra.mxu0 %v771
        %829 = vmatprep.subr.bf16.mxu0 %v776
        %830 = vmatpush1.bf16.msra.mxu0 %v775
        %831 = vmatprep.subr.bf16.mxu0 %v780
        %832 = vmatpush1.bf16.msra.mxu0 %v779
        %833 = vmatprep.subr.bf16.mxu0 %v784
        %834 = vmatpush1.bf16.msra.mxu0 %v783
        %835 = vmatprep.subr.bf16.mxu0 0
        %836 = vmatpush1.bf16.msra.mxu0 0
        %837 = vmatprep.subr.bf16.mxu0 0
        %838 = vmatpush1.bf16.msra.mxu0 0
        %839 = vmatprep.subr.bf16.mxu0 0
        %840 = vmatpush1.bf16.msra.mxu0 0
        %841 = vmatprep.subr.bf16.mxu0 0
        %842 = vmatpush1.bf16.msra.mxu0 0
        %843 = vmatprep.subr.bf16.mxu0 0
        %844 = vmatpush1.bf16.msra.mxu0 0
        %845 = vmatprep.subr.bf16.mxu0 0
        %846 = vmatpush1.bf16.msra.mxu0 0
        %847 = vmatprep.subr.bf16.mxu0 0
        %848 = vmatpush1.bf16.msra.mxu0 0
        %849 = vmatprep.subr.bf16.mxu0 0
        %850 = vmatpush1.bf16.msra.mxu0 0
        %851 = vmatprep.mubr.bf16.mxu0 0
        %852 = vmatmul.mubr.bf16.gmra.mrb[0].mxu0 %v655
        %v853 = vpop.f32.mrb[0].mxu0
        %v854 = vadd.f32 0.0, %v853
        %v855 = vpop.f32.mrb[0].mxu0
        %v856 = vadd.f32 0.0, %v855
        %v857 = vpop.f32.mrb[0].mxu0
        %v858 = vadd.f32 0.0, %v857
        %v859 = vpop.f32.mrb[0].mxu0
        %v860 = vadd.f32 0.0, %v859
        %861 = vmatprep.mubr.bf16.mxu0 0
        %862 = vmatmul.mubr.bf16.gmra.mrb[0].mxu0 %v656
        %v863 = vpop.f32.mrb[0].mxu0
        %v864 = vadd.f32 0.0, %v863
        %v865 = vpop.f32.mrb[0].mxu0
        %v866 = vadd.f32 0.0, %v865
        %v867 = vpop.f32.mrb[0].mxu0
        %v868 = vadd.f32 0.0, %v867
        %v869 = vpop.f32.mrb[0].mxu0
        %v870 = vadd.f32 0.0, %v869
        %871 = vdwg.mxu0
        %872 = vmatprep.subr.bf16.mxu0 %v758
        %873 = vmatpush1.bf16.msra.mxu0 %v757
        %874 = vmatprep.subr.bf16.mxu0 %v762
        %875 = vmatpush1.bf16.msra.mxu0 %v761
        %876 = vmatprep.subr.bf16.mxu0 %v766
        %877 = vmatpush1.bf16.msra.mxu0 %v765
        %878 = vmatprep.subr.bf16.mxu0 %v770
        %879 = vmatpush1.bf16.msra.mxu0 %v769
        %880 = vmatprep.subr.bf16.mxu0 %v774
        %881 = vmatpush1.bf16.msra.mxu0 %v773
        %882 = vmatprep.subr.bf16.mxu0 %v778
        %883 = vmatpush1.bf16.msra.mxu0 %v777
        %884 = vmatprep.subr.bf16.mxu0 %v782
        %885 = vmatpush1.bf16.msra.mxu0 %v781
        %886 = vmatprep.subr.bf16.mxu0 %v786
        %887 = vmatpush1.bf16.msra.mxu0 %v785
        %888 = vmatprep.subr.bf16.mxu0 0
        %889 = vmatpush1.bf16.msra.mxu0 0
        %890 = vmatprep.subr.bf16.mxu0 0
        %891 = vmatpush1.bf16.msra.mxu0 0
        %892 = vmatprep.subr.bf16.mxu0 0
        %893 = vmatpush1.bf16.msra.mxu0 0
        %894 = vmatprep.subr.bf16.mxu0 0
        %895 = vmatpush1.bf16.msra.mxu0 0
        %896 = vmatprep.subr.bf16.mxu0 0
        %897 = vmatpush1.bf16.msra.mxu0 0
        %898 = vmatprep.subr.bf16.mxu0 0
        %899 = vmatpush1.bf16.msra.mxu0 0
        %900 = vmatprep.subr.bf16.mxu0 0
        %901 = vmatpush1.bf16.msra.mxu0 0
        %902 = vmatprep.subr.bf16.mxu0 0
        %903 = vmatpush1.bf16.msra.mxu0 0
        %904 = vmatprep.mubr.bf16.mxu0 0
        %905 = vmatmul.mubr.bf16.gmra.mrb[0].mxu0 %v655
        %v906 = vpop.f32.mrb[0].mxu0
        %v907 = vadd.f32 0.0, %v906
        %v908 = vpop.f32.mrb[0].mxu0
        %v909 = vadd.f32 0.0, %v908
        %v910 = vpop.f32.mrb[0].mxu0
        %v911 = vadd.f32 0.0, %v910
        %v912 = vpop.f32.mrb[0].mxu0
        %v913 = vadd.f32 0.0, %v912
        %914 = vmatprep.mubr.bf16.mxu0 0
        %915 = vmatmul.mubr.bf16.gmra.mrb[0].mxu0 %v656
        %v916 = vpop.f32.mrb[0].mxu0
        %v917 = vadd.f32 0.0, %v916
        %v918 = vpop.f32.mrb[0].mxu0
        %v919 = vadd.f32 0.0, %v918
        %v920 = vpop.f32.mrb[0].mxu0
        %v921 = vadd.f32 0.0, %v920
        %v922 = vpop.f32.mrb[0].mxu0
        %v923 = vadd.f32 0.0, %v922
        %924 = vdwg.mxu0
        %v925 = vld [vmem:[%s3] sm:$0xff]
        %v926 = vld [vmem:[%s3 + $0x8] sm:$0xff]
        %v927 = vld [vmem:[%s3 + $0x10] sm:$0xff]
        %v928 = vld [vmem:[%s3 + $0x18] sm:$0xff]
        %v929 = vld [vmem:[%s3 + $0x20] sm:$0xff]
        %v930 = vld [vmem:[%s3 + $0x28] sm:$0xff]
        %v931 = vld [vmem:[%s3 + $0x30] sm:$0xff]
        %v932 = vld [vmem:[%s3 + $0x38] sm:$0xff]
        %v933 = vld [vmem:[%s3 + $0x40] sm:$0xff]
        %v934 = vld [vmem:[%s3 + $0x48] sm:$0xff]
        %v935 = vld [vmem:[%s3 + $0x50] sm:$0xff]
        %v936 = vld [vmem:[%s3 + $0x58] sm:$0xff]
        %v937 = vld [vmem:[%s3 + $0x60] sm:$0xff]
        %v938 = vld [vmem:[%s3 + $0x68] sm:$0xff]
        %v939 = vld [vmem:[%s3 + $0x70] sm:$0xff]
        %v940 = vld [vmem:[%s3 + $0x78] sm:$0xff]
        %v941 = vunpack.c.l.b16 %v516
        %v942 = vunpack.c.l.b16 %v530
        %v943 = vunpack.c.l.b16 %v544
        %v944 = vunpack.c.l.b16 %v558
        %v945 = vpack.c.b16 %v942, %v941
        %v946 = vpack.c.b16 %v944, %v943
        %v965 = vunpack.c.l.b16 %v925
        %v966 = vunpack.c.h.b16 %v925
        %v967 = vunpack.c.l.b16 %v926
        %v968 = vunpack.c.h.b16 %v926
        %v969 = vunpack.c.l.b16 %v927
        %v970 = vunpack.c.h.b16 %v927
        %v971 = vunpack.c.l.b16 %v928
        %v972 = vunpack.c.h.b16 %v928
        %v973 = vunpack.c.l.b16 %v929
        %v974 = vunpack.c.h.b16 %v929
        %v975 = vunpack.c.l.b16 %v930
        %v976 = vunpack.c.h.b16 %v930
        %v977 = vunpack.c.l.b16 %v931
        %v978 = vunpack.c.h.b16 %v931
        %v979 = vunpack.c.l.b16 %v932
        %v980 = vunpack.c.h.b16 %v932
        %v981 = vunpack.c.l.b16 %v933
        %v982 = vunpack.c.h.b16 %v933
        %v983 = vunpack.c.l.b16 %v934
        %v984 = vunpack.c.h.b16 %v934
        %v985 = vunpack.c.l.b16 %v935
        %v986 = vunpack.c.h.b16 %v935
        %v987 = vunpack.c.l.b16 %v936
        %v988 = vunpack.c.h.b16 %v936
        %v989 = vunpack.c.l.b16 %v937
        %v990 = vunpack.c.h.b16 %v937
        %v991 = vunpack.c.l.b16 %v938
        %v992 = vunpack.c.h.b16 %v938
        %v993 = vunpack.c.l.b16 %v939
        %v994 = vunpack.c.h.b16 %v939
        %v995 = vunpack.c.l.b16 %v940
        %v996 = vunpack.c.h.b16 %v940
        %v997 = vpack.c.b16 %v967, %v965
        %v998 = vpack.c.b16 %v968, %v966
        %v999 = vpack.c.b16 %v971, %v969
        %v1000 = vpack.c.b16 %v972, %v970
        %v1001 = vpack.c.b16 %v975, %v973
        %v1002 = vpack.c.b16 %v976, %v974
        %v1003 = vpack.c.b16 %v979, %v977
        %v1004 = vpack.c.b16 %v980, %v978
        %v1005 = vpack.c.b16 %v983, %v981
        %v1006 = vpack.c.b16 %v984, %v982
        %v1007 = vpack.c.b16 %v987, %v985
        %v1008 = vpack.c.b16 %v988, %v986
        %v1009 = vpack.c.b16 %v991, %v989
        %v1010 = vpack.c.b16 %v992, %v990
        %v1011 = vpack.c.b16 %v995, %v993
        %v1012 = vpack.c.b16 %v996, %v994
        %1029 = vmatprep.subr.bf16.mxu0 %v998
        %1030 = vmatpush1.bf16.msra.mxu0 %v997
        %1031 = vmatprep.subr.bf16.mxu0 %v1000
        %1032 = vmatpush1.bf16.msra.mxu0 %v999
        %1033 = vmatprep.subr.bf16.mxu0 %v1002
        %1034 = vmatpush1.bf16.msra.mxu0 %v1001
        %1035 = vmatprep.subr.bf16.mxu0 %v1004
        %1036 = vmatpush1.bf16.msra.mxu0 %v1003
        %1037 = vmatprep.subr.bf16.mxu0 %v1006
        %1038 = vmatpush1.bf16.msra.mxu0 %v1005
        %1039 = vmatprep.subr.bf16.mxu0 %v1008
        %1040 = vmatpush1.bf16.msra.mxu0 %v1007
        %1041 = vmatprep.subr.bf16.mxu0 %v1010
        %1042 = vmatpush1.bf16.msra.mxu0 %v1009
        %1043 = vmatprep.subr.bf16.mxu0 %v1012
        %1044 = vmatpush1.bf16.msra.mxu0 %v1011
        %1045 = vmatprep.subr.bf16.mxu0 0
        %1046 = vmatpush1.bf16.msra.mxu0 0
        %1047 = vmatprep.subr.bf16.mxu0 0
        %1048 = vmatpush1.bf16.msra.mxu0 0
        %1049 = vmatprep.subr.bf16.mxu0 0
        %1050 = vmatpush1.bf16.msra.mxu0 0
        %1051 = vmatprep.subr.bf16.mxu0 0
        %1052 = vmatpush1.bf16.msra.mxu0 0
        %1053 = vmatprep.subr.bf16.mxu0 0
        %1054 = vmatpush1.bf16.msra.mxu0 0
        %1055 = vmatprep.subr.bf16.mxu0 0
        %1056 = vmatpush1.bf16.msra.mxu0 0
        %1057 = vmatprep.subr.bf16.mxu0 0
        %1058 = vmatpush1.bf16.msra.mxu0 0
        %1059 = vmatprep.subr.bf16.mxu0 0
        %1060 = vmatpush1.bf16.msra.mxu0 0
        %1061 = vmatprep.mubr.bf16.mxu0 0
        %1062 = vmatmul.mubr.bf16.gmra.mrb[0].mxu0 %v945
        %v1063 = vpop.f32.mrb[0].mxu0
        %v1064 = vadd.f32 0.0, %v1063
        %v1065 = vpop.f32.mrb[0].mxu0
        %v1066 = vadd.f32 0.0, %v1065
        %v1067 = vpop.f32.mrb[0].mxu0
        %v1068 = vadd.f32 0.0, %v1067
        %v1069 = vpop.f32.mrb[0].mxu0
        %v1070 = vadd.f32 0.0, %v1069
        %1071 = vmatprep.mubr.bf16.mxu0 0
        %1072 = vmatmul.mubr.bf16.gmra.mrb[0].mxu0 %v946
        %v1073 = vpop.f32.mrb[0].mxu0
        %v1074 = vadd.f32 0.0, %v1073
        %v1075 = vpop.f32.mrb[0].mxu0
        %v1076 = vadd.f32 0.0, %v1075
        %v1077 = vpop.f32.mrb[0].mxu0
        %v1078 = vadd.f32 0.0, %v1077
        %v1079 = vpop.f32.mrb[0].mxu0
        %v1080 = vadd.f32 0.0, %v1079
        %1081 = vdwg.mxu0
        %v1082 = vld [vmem:[#allocation4] sm:$0xff]
        %v1083 = vld [vmem:[#allocation4 + $0x8] sm:$0xff]
        %v1084 = vld [vmem:[#allocation4 + $0x10] sm:$0xff]
        %v1085 = vld [vmem:[#allocation4 + $0x18] sm:$0xff]
        %v1086 = vld [vmem:[#allocation4 + $0x20] sm:$0xff]
        %v1087 = vld [vmem:[#allocation4 + $0x28] sm:$0xff]
        %v1088 = vld [vmem:[#allocation4 + $0x30] sm:$0xff]
        %v1089 = vld [vmem:[#allocation4 + $0x38] sm:$0xff]
        %v1090 = vld [vmem:[#allocation4 + $0x40] sm:$0xff]
        %v1091 = vld [vmem:[#allocation4 + $0x48] sm:$0xff]
        %v1092 = vld [vmem:[#allocation4 + $0x50] sm:$0xff]
        %v1093 = vld [vmem:[#allocation4 + $0x58] sm:$0xff]
        %v1094 = vld [vmem:[#allocation4 + $0x60] sm:$0xff]
        %v1095 = vld [vmem:[#allocation4 + $0x68] sm:$0xff]
        %v1096 = vld [vmem:[#allocation4 + $0x70] sm:$0xff]
        %v1097 = vld [vmem:[#allocation4 + $0x78] sm:$0xff]
        %v1102 = vunpack.c.l.b16 %v492
        %v1103 = vunpack.c.l.b16 %v494
        %v1104 = vunpack.c.l.b16 %v496
        %v1105 = vunpack.c.l.b16 %v498
        %v1106 = vpack.c.b16 %v1103, %v1102
        %v1107 = vpack.c.b16 %v1105, %v1104
        %v1126 = vunpack.c.l.b16 %v1082
        %v1127 = vunpack.c.h.b16 %v1082
        %v1128 = vunpack.c.l.b16 %v1083
        %v1129 = vunpack.c.h.b16 %v1083
        %v1130 = vunpack.c.l.b16 %v1084
        %v1131 = vunpack.c.h.b16 %v1084
        %v1132 = vunpack.c.l.b16 %v1085
        %v1133 = vunpack.c.h.b16 %v1085
        %v1134 = vunpack.c.l.b16 %v1086
        %v1135 = vunpack.c.h.b16 %v1086
        %v1136 = vunpack.c.l.b16 %v1087
        %v1137 = vunpack.c.h.b16 %v1087
        %v1138 = vunpack.c.l.b16 %v1088
        %v1139 = vunpack.c.h.b16 %v1088
        %v1140 = vunpack.c.l.b16 %v1089
        %v1141 = vunpack.c.h.b16 %v1089
        %v1142 = vunpack.c.l.b16 %v1090
        %v1143 = vunpack.c.h.b16 %v1090
        %v1144 = vunpack.c.l.b16 %v1091
        %v1145 = vunpack.c.h.b16 %v1091
        %v1146 = vunpack.c.l.b16 %v1092
        %v1147 = vunpack.c.h.b16 %v1092
        %v1148 = vunpack.c.l.b16 %v1093
        %v1149 = vunpack.c.h.b16 %v1093
        %v1150 = vunpack.c.l.b16 %v1094
        %v1151 = vunpack.c.h.b16 %v1094
        %v1152 = vunpack.c.l.b16 %v1095
        %v1153 = vunpack.c.h.b16 %v1095
        %v1154 = vunpack.c.l.b16 %v1096
        %v1155 = vunpack.c.h.b16 %v1096
        %v1156 = vunpack.c.l.b16 %v1097
        %v1157 = vunpack.c.h.b16 %v1097
        %v1158 = vpack.c.b16 %v1128, %v1126
        %v1159 = vpack.c.b16 %v1129, %v1127
        %v1160 = vpack.c.b16 %v1132, %v1130
        %v1161 = vpack.c.b16 %v1133, %v1131
        %v1162 = vpack.c.b16 %v1136, %v1134
        %v1163 = vpack.c.b16 %v1137, %v1135
        %v1164 = vpack.c.b16 %v1140, %v1138
        %v1165 = vpack.c.b16 %v1141, %v1139
        %v1166 = vpack.c.b16 %v1144, %v1142
        %v1167 = vpack.c.b16 %v1145, %v1143
        %v1168 = vpack.c.b16 %v1148, %v1146
        %v1169 = vpack.c.b16 %v1149, %v1147
        %v1170 = vpack.c.b16 %v1152, %v1150
        %v1171 = vpack.c.b16 %v1153, %v1151
        %v1172 = vpack.c.b16 %v1156, %v1154
        %v1173 = vpack.c.b16 %v1157, %v1155
        %1190 = vmatprep.subr.bf16.mxu0 %v1159
        %1191 = vmatpush1.bf16.msra.mxu0 %v1158
        %1192 = vmatprep.subr.bf16.mxu0 %v1161
        %1193 = vmatpush1.bf16.msra.mxu0 %v1160
        %1194 = vmatprep.subr.bf16.mxu0 %v1163
        %1195 = vmatpush1.bf16.msra.mxu0 %v1162
        %1196 = vmatprep.subr.bf16.mxu0 %v1165
        %1197 = vmatpush1.bf16.msra.mxu0 %v1164
        %1198 = vmatprep.subr.bf16.mxu0 %v1167
        %1199 = vmatpush1.bf16.msra.mxu0 %v1166
        %1200 = vmatprep.subr.bf16.mxu0 %v1169
        %1201 = vmatpush1.bf16.msra.mxu0 %v1168
        %1202 = vmatprep.subr.bf16.mxu0 %v1171
        %1203 = vmatpush1.bf16.msra.mxu0 %v1170
        %1204 = vmatprep.subr.bf16.mxu0 %v1173
        %1205 = vmatpush1.bf16.msra.mxu0 %v1172
        %1206 = vmatprep.subr.bf16.mxu0 0
        %1207 = vmatpush1.bf16.msra.mxu0 0
        %1208 = vmatprep.subr.bf16.mxu0 0
        %1209 = vmatpush1.bf16.msra.mxu0 0
        %1210 = vmatprep.subr.bf16.mxu0 0
        %1211 = vmatpush1.bf16.msra.mxu0 0
        %1212 = vmatprep.subr.bf16.mxu0 0
        %1213 = vmatpush1.bf16.msra.mxu0 0
        %1214 = vmatprep.subr.bf16.mxu0 0
        %1215 = vmatpush1.bf16.msra.mxu0 0
        %1216 = vmatprep.subr.bf16.mxu0 0
        %1217 = vmatpush1.bf16.msra.mxu0 0
        %1218 = vmatprep.subr.bf16.mxu0 0
        %1219 = vmatpush1.bf16.msra.mxu0 0
        %1220 = vmatprep.subr.bf16.mxu0 0
        %1221 = vmatpush1.bf16.msra.mxu0 0
        %1222 = vmatprep.mubr.bf16.mxu0 0
        %1223 = vmatmul.mubr.bf16.gmra.mrb[0].mxu0 %v1106
        %v1224 = vpop.f32.mrb[0].mxu0
        %v1225 = vadd.f32 0.0, %v1224
        %v1226 = vpop.f32.mrb[0].mxu0
        %v1227 = vadd.f32 0.0, %v1226
        %v1228 = vpop.f32.mrb[0].mxu0
        %v1229 = vadd.f32 0.0, %v1228
        %v1230 = vpop.f32.mrb[0].mxu0
        %v1231 = vadd.f32 0.0, %v1230
        %1232 = vmatprep.mubr.bf16.mxu0 0
        %1233 = vmatmul.mubr.bf16.gmra.mrb[0].mxu0 %v1107
        %v1234 = vpop.f32.mrb[0].mxu0
        %v1235 = vadd.f32 0.0, %v1234
        %v1236 = vpop.f32.mrb[0].mxu0
        %v1237 = vadd.f32 0.0, %v1236
        %v1238 = vpop.f32.mrb[0].mxu0
        %v1239 = vadd.f32 0.0, %v1238
        %v1240 = vpop.f32.mrb[0].mxu0
        %v1241 = vadd.f32 0.0, %v1240
        %1242 = vdwg.mxu0
        %v1243 = vld [vmem:[#allocation7] sm:$0xf]
        %v1244 = vld [vmem:[#allocation7 + $0x4] sm:$0xf]
        %v1245 = vld [vmem:[#allocation7 + $0x8] sm:$0xf]
        %v1246 = vld [vmem:[#allocation7 + $0xc] sm:$0xf]
        %v1247 = vld [vmem:[#allocation7 + $0x10] sm:$0xf]
        %v1248 = vld [vmem:[#allocation7 + $0x14] sm:$0xf]
        %v1249 = vld [vmem:[#allocation7 + $0x18] sm:$0xf]
        %v1250 = vld [vmem:[#allocation7 + $0x1c] sm:$0xf]
        %v1251 = vld [vmem:[#allocation7 + $0x20] sm:$0xf]
        %v1252 = vld [vmem:[#allocation7 + $0x24] sm:$0xf]
        %v1253 = vld [vmem:[#allocation7 + $0x28] sm:$0xf]
        %v1254 = vld [vmem:[#allocation7 + $0x2c] sm:$0xf]
        %v1255 = vld [vmem:[#allocation7 + $0x30] sm:$0xf]
        %v1256 = vld [vmem:[#allocation7 + $0x34] sm:$0xf]
        %v1257 = vld [vmem:[#allocation7 + $0x38] sm:$0xf]
        %v1258 = vld [vmem:[#allocation7 + $0x3c] sm:$0xf]
        %v1259 = vunpack.c.l.b16 %v572
        %v1260 = vunpack.c.l.b16 %v586
        %v1261 = vunpack.c.l.b16 %v600
        %v1262 = vunpack.c.l.b16 %v614
        %v1263 = vpack.c.b16 %v1260, %v1259
        %v1264 = vpack.c.b16 %v1262, %v1261
        %v1283 = vunpack.c.l.b16 %v1243
        %v1284 = vunpack.c.l.b16 %v1244
        %v1285 = vunpack.c.l.b16 %v1245
        %v1286 = vunpack.c.l.b16 %v1246
        %v1287 = vunpack.c.l.b16 %v1247
        %v1288 = vunpack.c.l.b16 %v1248
        %v1289 = vunpack.c.l.b16 %v1249
        %v1290 = vunpack.c.l.b16 %v1250
        %v1291 = vunpack.c.l.b16 %v1251
        %v1292 = vunpack.c.l.b16 %v1252
        %v1293 = vunpack.c.l.b16 %v1253
        %v1294 = vunpack.c.l.b16 %v1254
        %v1295 = vunpack.c.l.b16 %v1255
        %v1296 = vunpack.c.l.b16 %v1256
        %v1297 = vunpack.c.l.b16 %v1257
        %v1298 = vunpack.c.l.b16 %v1258
        %v1299 = vpack.c.b16 %v1284, %v1283
        %v1300 = vpack.c.b16 %v1286, %v1285
        %v1301 = vpack.c.b16 %v1288, %v1287
        %v1302 = vpack.c.b16 %v1290, %v1289
        %v1303 = vpack.c.b16 %v1292, %v1291
        %v1304 = vpack.c.b16 %v1294, %v1293
        %v1305 = vpack.c.b16 %v1296, %v1295
        %v1306 = vpack.c.b16 %v1298, %v1297
        %1315 = vmatprep.subr.bf16.mxu0 0
        %1316 = vmatpush1.bf16.msra.mxu0 %v1299
        %1317 = vmatprep.subr.bf16.mxu0 0
        %1318 = vmatpush1.bf16.msra.mxu0 %v1300
        %1319 = vmatprep.subr.bf16.mxu0 0
        %1320 = vmatpush1.bf16.msra.mxu0 %v1301
        %1321 = vmatprep.subr.bf16.mxu0 0
        %1322 = vmatpush1.bf16.msra.mxu0 %v1302
        %1323 = vmatprep.subr.bf16.mxu0 0
        %1324 = vmatpush1.bf16.msra.mxu0 %v1303
        %1325 = vmatprep.subr.bf16.mxu0 0
        %1326 = vmatpush1.bf16.msra.mxu0 %v1304
        %1327 = vmatprep.subr.bf16.mxu0 0
        %1328 = vmatpush1.bf16.msra.mxu0 %v1305
        %1329 = vmatprep.subr.bf16.mxu0 0
        %1330 = vmatpush1.bf16.msra.mxu0 %v1306
        %1331 = vmatprep.subr.bf16.mxu0 0
        %1332 = vmatpush1.bf16.msra.mxu0 0
        %1333 = vmatprep.subr.bf16.mxu0 0
        %1334 = vmatpush1.bf16.msra.mxu0 0
        %1335 = vmatprep.subr.bf16.mxu0 0
        %1336 = vmatpush1.bf16.msra.mxu0 0
        %1337 = vmatprep.subr.bf16.mxu0 0
        %1338 = vmatpush1.bf16.msra.mxu0 0
        %1339 = vmatprep.subr.bf16.mxu0 0
        %1340 = vmatpush1.bf16.msra.mxu0 0
        %1341 = vmatprep.subr.bf16.mxu0 0
        %1342 = vmatpush1.bf16.msra.mxu0 0
        %1343 = vmatprep.subr.bf16.mxu0 0
        %1344 = vmatpush1.bf16.msra.mxu0 0
        %1345 = vmatprep.subr.bf16.mxu0 0
        %1346 = vmatpush1.bf16.msra.mxu0 0
        %1347 = vmatprep.mubr.bf16.mxu0 0
        %1348 = vmatmul.mubr.bf16.gmra.mrb[0].mxu0 %v1263
        %v1349 = vpop.f32.mrb[0].mxu0
        %v1350 = vadd.f32 0.0, %v1349
        %v1351 = vpop.f32.mrb[0].mxu0
        %v1352 = vpop.f32.mrb[0].mxu0
        %v1353 = vadd.f32 0.0, %v1352
        %v1354 = vpop.f32.mrb[0].mxu0
        %1355 = vmatprep.mubr.bf16.mxu0 0
        %1356 = vmatmul.mubr.bf16.gmra.mrb[0].mxu0 %v1264
        %v1357 = vpop.f32.mrb[0].mxu0
        %v1358 = vadd.f32 0.0, %v1357
        %v1359 = vpop.f32.mrb[0].mxu0
        %v1360 = vpop.f32.mrb[0].mxu0
        %v1361 = vadd.f32 0.0, %v1360
        %v1362 = vpop.f32.mrb[0].mxu0
        %1363 = vdwg.mxu0
        %v1364 = vadd.f32 %v856, %v1064
        %v1365 = vadd.f32 %v860, %v1068
        %v1366 = vadd.f32 %v866, %v1074
        %v1367 = vadd.f32 %v870, %v1078
        %v1368 = vadd.f32 %v907, %v1225
        %v1369 = vadd.f32 %v911, %v1229
        %v1370 = vadd.f32 %v917, %v1235
        %v1371 = vadd.f32 %v921, %v1239
        %v1372 = vadd.f32 %v909, %v1066
        %v1373 = vadd.f32 %v913, %v1070
        %v1374 = vadd.f32 %v919, %v1076
        %v1375 = vadd.f32 %v923, %v1080
        %v1376 = vadd.f32 %v1372, %v1227
        %v1377 = vadd.f32 %v1373, %v1231
        %v1378 = vadd.f32 %v1374, %v1237
        %v1379 = vadd.f32 %v1375, %v1241
        %v1380 = vadd.f32 %v1376, %v1350
        %v1381 = vadd.f32 %v1377, %v1353
        %v1382 = vadd.f32 %v1378, %v1358
        %v1383 = vadd.f32 %v1379, %v1361
        %1384 = vst [vmem:[%s472] sm:$0xff] %v854
        %1385 = vst [vmem:[%s472 + $0x20] sm:$0xff] %v858
        %1386 = vst [vmem:[%s472 + $0x40] sm:$0xff] %v864
        %1387 = vst [vmem:[%s472 + $0x60] sm:$0xff] %v868
        %v1388 = vadd.f32 %v854, %v858
        %v1389 = vadd.f32 %v1388, %v864
        %v1390 = vadd.f32 %v1389, %v868
        %v1391 = vrot.slane %v1390, 4
        %v1392 = vadd.f32 %v1390, %v1391
        %v1393 = vrot.slane %v1392, 2
        %v1394 = vadd.f32 %v1392, %v1393
        %v1395 = vrot.slane %v1394, 1
        %v1396 = vadd.f32 %v1394, %v1395
        %1397 = vst [vmem:[%s479] sm:$0x1] %v1396
        %v1398 = vmul.f32 %v854, %v854
        %v1399 = vmul.f32 %v858, %v858
        %v1400 = vmul.f32 %v864, %v864
        %v1401 = vmul.f32 %v868, %v868
        %v1402 = vadd.f32 %v1398, %v1399
        %v1403 = vadd.f32 %v1402, %v1400
        %v1404 = vadd.f32 %v1403, %v1401
        %v1405 = vrot.slane %v1404, 4
        %v1406 = vadd.f32 %v1404, %v1405
        %v1407 = vrot.slane %v1406, 2
        %v1408 = vadd.f32 %v1406, %v1407
        %v1409 = vrot.slane %v1408, 1
        %v1410 = vadd.f32 %v1408, %v1409
        %1411 = vst [vmem:[%s479 + $0x1] sm:$0x1] %v1410
        %1412 = vst [vmem:[%s472 + $0x8] sm:$0xff] %v1364
        %1413 = vst [vmem:[%s472 + $0x28] sm:$0xff] %v1365
        %1414 = vst [vmem:[%s472 + $0x48] sm:$0xff] %v1366
        %1415 = vst [vmem:[%s472 + $0x68] sm:$0xff] %v1367
        %v1416 = vadd.f32 %v1364, %v1365
        %v1417 = vadd.f32 %v1416, %v1366
        %v1418 = vadd.f32 %v1417, %v1367
        %v1419 = vrot.slane %v1418, 4
        %v1420 = vadd.f32 %v1418, %v1419
        %v1421 = vrot.slane %v1420, 2
        %v1422 = vadd.f32 %v1420, %v1421
        %v1423 = vrot.slane %v1422, 1
        %v1424 = vadd.f32 %v1422, %v1423
        %1425 = vst [vmem:[%s479 + $0x2] sm:$0x1] %v1424
        %v1426 = vmul.f32 %v1364, %v1364
        %v1427 = vmul.f32 %v1365, %v1365
        %v1428 = vmul.f32 %v1366, %v1366
        %v1429 = vmul.f32 %v1367, %v1367
        %v1430 = vadd.f32 %v1426, %v1427
        %v1431 = vadd.f32 %v1430, %v1428
        %v1432 = vadd.f32 %v1431, %v1429
        %v1433 = vrot.slane %v1432, 4
        %v1434 = vadd.f32 %v1432, %v1433
        %v1435 = vrot.slane %v1434, 2
        %v1436 = vadd.f32 %v1434, %v1435
        %v1437 = vrot.slane %v1436, 1
        %v1438 = vadd.f32 %v1436, %v1437
        %1439 = vst [vmem:[%s479 + $0x3] sm:$0x1] %v1438
        %1440 = vst [vmem:[%s472 + $0x10] sm:$0xff] %v1368
        %1441 = vst [vmem:[%s472 + $0x30] sm:$0xff] %v1369
        %1442 = vst [vmem:[%s472 + $0x50] sm:$0xff] %v1370
        %1443 = vst [vmem:[%s472 + $0x70] sm:$0xff] %v1371
        %v1444 = vadd.f32 %v1368, %v1369
        %v1445 = vadd.f32 %v1444, %v1370
        %v1446 = vadd.f32 %v1445, %v1371
        %v1447 = vrot.slane %v1446, 4
        %v1448 = vadd.f32 %v1446, %v1447
        %v1449 = vrot.slane %v1448, 2
        %v1450 = vadd.f32 %v1448, %v1449
        %v1451 = vrot.slane %v1450, 1
        %v1452 = vadd.f32 %v1450, %v1451
        %1453 = vst [vmem:[%s479 + $0x4] sm:$0x1] %v1452
        %v1454 = vmul.f32 %v1368, %v1368
        %v1455 = vmul.f32 %v1369, %v1369
        %v1456 = vmul.f32 %v1370, %v1370
        %v1457 = vmul.f32 %v1371, %v1371
        %v1458 = vadd.f32 %v1454, %v1455
        %v1459 = vadd.f32 %v1458, %v1456
        %v1460 = vadd.f32 %v1459, %v1457
        %v1461 = vrot.slane %v1460, 4
        %v1462 = vadd.f32 %v1460, %v1461
        %v1463 = vrot.slane %v1462, 2
        %v1464 = vadd.f32 %v1462, %v1463
        %v1465 = vrot.slane %v1464, 1
        %v1466 = vadd.f32 %v1464, %v1465
        %1467 = vst [vmem:[%s479 + $0x5] sm:$0x1] %v1466
        %1468 = vst [vmem:[%s472 + $0x18] sm:$0xff] %v1380
        %1469 = vst [vmem:[%s472 + $0x38] sm:$0xff] %v1381
        %1470 = vst [vmem:[%s472 + $0x58] sm:$0xff] %v1382
        %1471 = vst [vmem:[%s472 + $0x78] sm:$0xff] %v1383
        %v1472 = vadd.f32 %v1380, %v1381
        %v1473 = vadd.f32 %v1472, %v1382
        %v1474 = vadd.f32 %v1473, %v1383
        %v1475 = vrot.slane %v1474, 4
        %v1476 = vadd.f32 %v1474, %v1475
        %v1477 = vrot.slane %v1476, 2
        %v1478 = vadd.f32 %v1476, %v1477
        %v1479 = vrot.slane %v1478, 1
        %v1480 = vadd.f32 %v1478, %v1479
        %1481 = vst [vmem:[%s479 + $0x6] sm:$0x1] %v1480
        %v1482 = vmul.f32 %v1380, %v1380
        %v1483 = vmul.f32 %v1381, %v1381
        %v1484 = vmul.f32 %v1382, %v1382
        %v1485 = vmul.f32 %v1383, %v1383
        %v1486 = vadd.f32 %v1482, %v1483
        %v1487 = vadd.f32 %v1486, %v1484
        %v1488 = vadd.f32 %v1487, %v1485
        %v1489 = vrot.slane %v1488, 4
        %v1490 = vadd.f32 %v1488, %v1489
        %v1491 = vrot.slane %v1490, 2
        %v1492 = vadd.f32 %v1490, %v1491
        %v1493 = vrot.slane %v1492, 1
        %v1494 = vadd.f32 %v1492, %v1493
        %1495 = vst [vmem:[%s479 + $0x7] sm:$0x1] %v1494
        %s1496 = sand.u32 %s171, 1
        %s1497 = scalar_lea.sflag [#allocation6], %s1496
        %s1498 = sand.u32 %s171, 1
        %s1499 = smul.addr %s1498, 128
        %s1500 = scalar_lea.vmem [#allocation9], %s1499
        %s1501 = sand.u32 %s197, 1
        %s1502 = scalar_lea.sflag [#allocation11], %s1501
        %s1503 = sand.u32 %s197, 1
        %s1504 = smul.addr %s1503, 8
        %s1505 = scalar_lea.vmem [#allocation10], %s1504
        // Predicated region
        $region135: #{tpu_custom_call.1} parent=117 // pred_check
          %p1506 = pneg %p181
        $region136: #{tpu_custom_call.1} parent=117 // pred_check_branch
          %1508 = sbr.rel (%p1506) target = $region138
        $region137: #{tpu_custom_call.1} parent=117 // pred_region
          #allocation13 [shape = 'u32[6]{0}', space=smem, size = 0x18, scoped, tag = 'DMA stride descriptor']
          %s1509 = smul.u32 2, %s27
          %s1511 = ssub.s32 2048, 2048
          %1512 = vsyncadd %s1497, %s1511
          %s1513 = smul.addr %s1509, 4
          %s1514 = smul.addr %s1513, 128
          %s1515 = scalar_lea.hbm %s6, %s1514
          %s1517 = sshll.u32 1, 14
          %s1518 = sxor.u32 4294967295, %s1517
          %s1521 = sshll.u32 7, 18
          %s1522 = sxor.u32 4294967295, %s1521
          %s1523 = sand.u32 0, %s1522
          %s1525 = sor.u32 %s1523, 0
          %s1527 = sshll.u32 3, 24
          %s1528 = sxor.u32 4294967295, %s1527
          %s1529 = sand.u32 %s1525, %s1528
          %s1531 = sor.u32 %s1529, 0
          %s1532 = sshll.u32 %s1500, 4
          %s1533 = int_to_ptr.vmem [resolvable:$true] %s1532
          %1539 = sst [smem:[#allocation13]] 1024
          %s1540 = scalar_lea.smem [#allocation13], 1
          %1541 = sst [smem:[%s1540]] 4096
          %s1542 = scalar_lea.smem [#allocation13], 2
          %1543 = sst [smem:[%s1542]] 2
          %s1544 = scalar_lea.smem [#allocation13], 3
          %1545 = sst [smem:[%s1544]] 512
          %s1546 = scalar_lea.smem [#allocation13], 4
          %1547 = sst [smem:[%s1546]] 512
          %s1548 = scalar_lea.smem [#allocation13], 5
          %1549 = sst [smem:[%s1548]] 32
          %1551 = dma.general %s1533, 2048, %s1515, %s1497, [#allocation12], [#allocation13], %s1531, 0
        $region138: #{tpu_custom_call.1} parent=117 // pred_fallthru
          _
        // Predicated region
        $region139: #{tpu_custom_call.1} parent=117 // pred_check
          %p1552 = pneg %p207
        $region140: #{tpu_custom_call.1} parent=117 // pred_check_branch
          %1554 = sbr.rel (%p1552) target = $region142
        $region141: #{tpu_custom_call.1} parent=117 // pred_region
          %s1556 = ssub.s32 128, 128
          %1557 = vsyncadd %s1502, %s1556
          %s1558 = smul.addr %s27, 4
          %s1559 = smul.addr %s1558, 32
          %s1560 = scalar_lea.hbm %s7, %s1559
          %s1562 = sshll.u32 %s1505, 4
          %s1563 = int_to_ptr.vmem [resolvable:$true] %s1562
          %1565 = dma.vmem_to_hbm [thread:$0]  %s1563, 128, %s1560, %s1502
        $region142: #{tpu_custom_call.1} parent=117 // pred_fallthru
          _
      $region118: #{tpu_custom_call.1} parent=5 // pred_fallthru
        _
      %p1566 = scmp.le.s32.totalorder 2, %s22
      // Predicated region
      $region143: #{tpu_custom_call.1} parent=5 // pred_check
        %p1567 = pneg %p1566
      $region144: #{tpu_custom_call.1} parent=5 // pred_check_branch
        %1569 = sbr.rel (%p1567) target = $region146
      $region145: #{tpu_custom_call.1} parent=5 // pred_region
        %s1570 = ssub.s32 %s22, 2
        // Predicated region
        $region147: #{tpu_custom_call.1} parent=145 // pred_check
          %p1571 = pneg %p187
        $region148: #{tpu_custom_call.1} parent=145 // pred_check_branch
          %1573 = sbr.rel (%p1571) target = $region150
        $region149: #{tpu_custom_call.1} parent=145 // pred_region
          %s1574 = sand.u32 %s172, 1
          %s1575 = scalar_lea.sflag [#allocation6], %s1574
          %s1576 = sand.u32 %s172, 1
          %s1577 = smul.addr %s1576, 128
          %s1578 = scalar_lea.vmem [#allocation9], %s1577
          %1579 = dma.done %s1575, 2048
        $region150: #{tpu_custom_call.1} parent=145 // pred_fallthru
          _
        // Predicated region
        $region151: #{tpu_custom_call.1} parent=145 // pred_check
          %p1580 = pneg %p213
        $region152: #{tpu_custom_call.1} parent=145 // pred_check_branch
          %1582 = sbr.rel (%p1580) target = $region154
        $region153: #{tpu_custom_call.1} parent=145 // pred_region
          %s1583 = sand.u32 %s198, 1
          %s1584 = scalar_lea.sflag [#allocation11], %s1583
          %s1585 = sand.u32 %s198, 1
          %s1586 = smul.addr %s1585, 8
          %s1587 = scalar_lea.vmem [#allocation10], %s1586
          %1588 = dma.done %s1584, 128
        $region154: #{tpu_custom_call.1} parent=145 // pred_fallthru
          _
      $region146: #{tpu_custom_call.1} parent=5 // pred_fallthru
        _
    $region6: #{tpu_custom_call.1} parent=1 // loop_footer
      %s26 = sadd.s32 1, %s22
    $region7: #{tpu_custom_call.1} parent=1 // loop_footer_branch
      %21 = sbr.rel target = $region3
    $region8: #{tpu_custom_call.1} parent=1 // loop_exit
      _
    %1589 = vsyncpa [#allocation5], 1
    %s1590 = scalar_lea.sflag [#allocation5], 1
    %1591 = vsyncpa %s1590, 1
    %1592 = vsyncpa [#allocation8], 1
    %1593 = vsyncpa [#allocation6], 1
    %s1594 = scalar_lea.sflag [#allocation6], 1
    %1595 = vsyncpa %s1594, 1
    %1596 = vsyncpa [#allocation11], 1
    %s1597 = scalar_lea.sflag [#allocation11], 1
    %1598 = vsyncpa %s1597, 1

</llo_original>
